<compile_context>
chip_gen: v7x
topology: tpu7x:2x2x1
jax: 0.10.0
libtpu: 0.0.40
codegen_flags: <defaults>
</compile_context>

<pallas_src>
import math

import jax
import jax.numpy as jnp
import numpy as np
from jax.experimental import pallas as pl
from jax.experimental.pallas import tpu as pltpu

FEATURES = 32
NUM_LAYERS = 4
PARAMS_PER_LAYER = 6  # W1, b1, W2, b2, W3, b3

_TILE_CAP = 32768                      # lane cap per grid step (fits all gens' VMEM)
_VMEM_LIMIT_BYTES = 48 * 1024 * 1024   # > v5e's 16MiB / v6e-v7x's 32MiB scoped default


def flow_kernel(x_ref, vec_ref, w2_ref, w3_ref, out_ref, cond_ref):
    """x_ref: (2, TN); vec_ref: (4*F, 128); w2_ref: (4*F, 128); w3_ref: (8, 128);
    out_ref: (3, TN) -> rows [x1, x2, logdet]; cond_ref: (8, TN) VMEM scratch."""
    F = FEATURES
    TN = cond_ref.shape[1]

    # Augmented conditioner block: row 1 = ones (bias), rows 2..7 = zeros.
    cond_ref[...] = jnp.zeros((8, TN), jnp.float32)
    cond_ref[1:2, :] = jnp.ones((1, TN), jnp.float32)

    x1 = x_ref[0:1, :]                      # (1, TN)
    x2 = x_ref[1:2, :]                      # (1, TN)
    s_prod = jnp.ones_like(x1)              # fused logdet accumulator

    for layer in range(NUM_LAYERS):
        r0 = layer * F
        s0 = layer * 2
        # Per-layer parameter views (static slices of resident slabs).
        W1aug = vec_ref[r0:r0 + F, 0:8]      # (F, 8): col0 = w1, col1 = b1, rest 0
        W2t = w2_ref[r0:r0 + F, 0:F]         # (F, F)  == W2^T
        b2_col = w2_ref[r0:r0 + F, F:F + 1]  # (F, 1)
        W3t = w3_ref[s0:s0 + 2, 0:F]         # (2, F)  == W3^T
        b3_col = w3_ref[s0:s0 + 2, F:F + 1]  # (2, 1)

        # Conditioner layer on the MXU via the augmented [x2; 1] block.
        cond_ref[0:1, :] = x2
        h = jnp.maximum(
            jnp.dot(W1aug, cond_ref[...], preferred_element_type=jnp.float32), 0.0)  # (F, TN)
        h = jnp.maximum(
            jnp.dot(W2t, h, preferred_element_type=jnp.float32) + b2_col, 0.0)       # (F, TN)
        st = jnp.dot(W3t, h, preferred_element_type=jnp.float32) + b3_col            # (2, TN)
        s = st[0:1, :]
        t = st[1:2, :]

        # AffineLayer: x1 = x1 * s + t ; logdet += log(|s|)  (log deferred).
        x1 = x1 * s + t
        s_prod = s_prod * s

        # x.flip(1): swap the two coordinate rows for the next layer.
        x1, x2 = x2, x1

    # Lane-dense writeback of everything into one (3, TN) output block.
    out_ref[0:1, :] = x1
    out_ref[1:2, :] = x2
    out_ref[2:3, :] = jnp.log(jnp.abs(s_prod))


def pack_params(params):
    """Pack the 24 per-layer Linear params into 3 small resident, lane-padded slabs.

    vec_slab : (NUM_LAYERS*F, 128)  cols [w1_col | b1_col | 0 ...]
    w2_slab  : (NUM_LAYERS*F, 128)  cols [  W2^T | b2_col | 0 ...]
    w3_slab  : (NUM_LAYERS*2, 128)  cols [  W3^T | b3_col | 0 ...]
    Weights are stored as (in_features, out_features); biases as (1, out_features).
    """
    F = FEATURES
    vec = np.zeros((NUM_LAYERS * F, 128), np.float32)
    w2s = np.zeros((NUM_LAYERS * F, 128), np.float32)
    w3s = np.zeros((NUM_LAYERS * 2, 128), np.float32)
    for layer in range(NUM_LAYERS):
        W1, b1, W2, b2, W3, b3 = (
            np.asarray(p, np.float32)
            for p in params[layer * PARAMS_PER_LAYER:(layer + 1) * PARAMS_PER_LAYER]
        )
        r0, s0 = layer * F, layer * 2
        vec[r0:r0 + F, 0:1] = W1.T           # (F, 1)
        vec[r0:r0 + F, 1:2] = b1.T           # (F, 1)
        w2s[r0:r0 + F, 0:F] = W2.T           # (F, F)
        w2s[r0:r0 + F, F:F + 1] = b2.T       # (F, 1)
        w3s[s0:s0 + 2, 0:F] = W3.T           # (2, F)
        w3s[s0:s0 + 2, F:F + 1] = b3.T       # (2, 1)
    return jnp.asarray(vec), jnp.asarray(w2s), jnp.asarray(w3s)


def _round_up(n, m):
    return ((n + m - 1) // m) * m


def _plan_tiles(n, cap=_TILE_CAP):
    """Return (padded_batch, tile_n): lane-dense tiles (multiple of 128), as big
    as the cap allows, with an even number of grid steps when there is more than
    one (so v7x's two TensorCores get balanced work)."""
    cap = max(128, (cap // 128) * 128)
    if n <= 128:
        return 128, 128
    n_pad = _round_up(n, 256)
    if n_pad // 2 <= cap:
        return n_pad, n_pad // 2          # exactly 2 balanced steps
    # Large batch: biggest divisor tile <= cap with an even step count.
    t = (min(cap, n_pad // 2) // 128) * 128
    while t >= 128:
        if n_pad % t == 0 and (n_pad // t) % 2 == 0:
            break
        t -= 128
    if t >= 4096:
        return n_pad, t
    # No decent divisor: accept more padding to keep tiles large and steps even.
    return _round_up(n, 2 * cap), cap


def flow_forward(x2n, params, tile_n=None):
    """Flow.forward.

    x2n    : (2, N) float array; row 0 = x1, row 1 = x2 (i.e. vstack layout,
             no wrapper transposes -> no extra HBM passes).
    returns: (x_out (2, N), logdet (N,))
    """
    x2n = jnp.asarray(x2n, jnp.float32)
    assert x2n.ndim == 2 and x2n.shape[0] == 2, "expected x of shape (2, N)"
    N = x2n.shape[1]

    if tile_n is None:
        N_pad, tile_n = _plan_tiles(N)
    else:
        assert tile_n % 128 == 0 or tile_n == N, "tile_n must be a multiple of 128"
        N_pad = _round_up(N, tile_n)
    if N_pad != N:
        x2n = jnp.pad(x2n, ((0, 0), (0, N_pad - N)))

    vec_slab, w2_slab, w3_slab = pack_params(params)

    out = pl.pallas_call(
        flow_kernel,
        out_shape=jax.ShapeDtypeStruct((3, N_pad), jnp.float32),
        grid_spec=pltpu.PrefetchScalarGridSpec(
            num_scalar_prefetch=0,
            grid=(N_pad // tile_n,),
            in_specs=[
                pl.BlockSpec((2, tile_n), lambda i: (0, i)),
                pl.BlockSpec(vec_slab.shape, lambda i: (0, 0)),
                pl.BlockSpec(w2_slab.shape, lambda i: (0, 0)),
                pl.BlockSpec(w3_slab.shape, lambda i: (0, 0)),
            ],
            out_specs=pl.BlockSpec((3, tile_n), lambda i: (0, i)),
            scratch_shapes=[pltpu.VMEM((8, tile_n), jnp.float32)],
        ),
        compiler_params=pltpu.CompilerParams(
            dimension_semantics=("parallel",),
            vmem_limit_bytes=_VMEM_LIMIT_BYTES,
        ),
    )(x2n, vec_slab, w2_slab, w3_slab)

    x_out = out[0:2, :N]    # (2, N)
    logdet = out[2, :N]     # (N,)
    return x_out, logdet


def init_params(key, features=FEATURES):
    """Deterministic synthetic init (PyTorch nn.Linear-style uniform bounds).
    Weights stored as (in_features, out_features), biases as (1, out_features)."""
    params = []
    layer_dims = [(1, features), (features, features), (features, 2)]
    for _ in range(NUM_LAYERS):
        for fin, fout in layer_dims:
            key, kw, kb = jax.random.split(key, 3)
            bound = 1.0 / math.sqrt(fin)
            W = jax.random.uniform(kw, (fin, fout), jnp.float32, -bound, bound)
            b = jax.random.uniform(kb, (1, fout), jnp.float32, -bound, bound)
            params += [W, b]
    return params


def flow_reference(x, params):
    """Pure-JAX reference mirroring the PyTorch Flow.forward semantics.
    x: (N, 2).  Returns ((N, 2), (N,))."""
    x1 = x[:, 0:1]
    x2 = x[:, 1:2]
    logdet = jnp.zeros_like(x1)
    for layer in range(NUM_LAYERS):
        W1, b1, W2, b2, W3, b3 = params[
            layer * PARAMS_PER_LAYER:(layer + 1) * PARAMS_PER_LAYER
        ]
        h = jnp.maximum(x2 @ W1 + b1, 0.0)
        h = jnp.maximum(h @ W2 + b2, 0.0)
        st = h @ W3 + b3
        s = st[:, 0:1]
        t = st[:, 1:2]
        x1 = x1 * s + t
        logdet = logdet + jnp.log(jnp.abs(s))
        x1, x2 = x2, x1
    return jnp.concatenate([x1, x2], axis=1), logdet[:, 0]


if __name__ == "__main__":
    key = jax.random.PRNGKey(0)
    kp, kx = jax.random.split(key)

    params = init_params(kp, FEATURES)

    # Small batch of 2-D points in vstack layout (2, N); N deliberately not a
    # multiple of 128 to exercise the pad-and-slice path.
    N = 300
    x2n = jax.random.normal(kx, (2, N), dtype=jnp.float32)

    x_out, logdet = flow_forward(x2n, params)
    jax.block_until_ready((x_out, logdet))

    x_ref, logdet_ref = flow_reference(x2n.T, params)
    assert np.allclose(np.asarray(x_out.T), np.asarray(x_ref), atol=1e-4, rtol=1e-4)
    assert np.allclose(np.asarray(logdet), np.asarray(logdet_ref), atol=1e-4, rtol=1e-4)

    print("KERNEL_OK")
</pallas_src>

<mosaic_0001>
module attributes {stable_mosaic.version = 11 : i64} {
  func.func @flow_kernel(%arg0: i32, %arg1: memref<2x256xf32, #tpu.memory_space<vmem>>, %arg2: memref<128x128xf32, #tpu.memory_space<vmem>>, %arg3: memref<128x128xf32, #tpu.memory_space<vmem>>, %arg4: memref<8x128xf32, #tpu.memory_space<vmem>>, %arg5: memref<3x256xf32, #tpu.memory_space<vmem>>, %arg6: memref<8x256xf32, #tpu.memory_space<vmem>>) attributes {dimension_semantics = [#tpu.dimension_semantics<parallel>], iteration_bounds = array<i64: 2>, scalar_prefetch = 0 : i64, scratch_operands = 1 : i64, tpu.core_type = #tpu.core_type<tc>, window_params = [{transform_indices = @transform_0, window_bounds = array<i64: 2, 256>}, {pipeline_mode = #tpu.pipeline_mode<synchronous>, transform_indices = @transform_1, window_bounds = array<i64: 128, 128>}, {pipeline_mode = #tpu.pipeline_mode<synchronous>, transform_indices = @transform_2, window_bounds = array<i64: 128, 128>}, {pipeline_mode = #tpu.pipeline_mode<synchronous>, transform_indices = @transform_3, window_bounds = array<i64: 8, 128>}, {transform_indices = @transform_4, window_bounds = array<i64: 3, 256>}]} {
    %cst = arith.constant 0.000000e+00 : f32
    %0 = vector.broadcast %cst : f32 to vector<8x256xf32>
    %c0 = arith.constant 0 : index
    %c0_0 = arith.constant 0 : index
    %1 = vector.load %arg6[%c0, %c0_0] : memref<8x256xf32, #tpu.memory_space<vmem>>, vector<8x256xf32>
    tpu.vector_store %arg6[%c0, %c0_0], %0 {strides = array<i32>} : memref<8x256xf32, #tpu.memory_space<vmem>>, vector<8x256xf32>,
    %cst_1 = arith.constant 1.000000e+00 : f32
    %2 = vector.broadcast %cst_1 : f32 to vector<1x256xf32>
    %c1 = arith.constant 1 : index
    %c0_2 = arith.constant 0 : index
    %3 = vector.load %arg6[%c1, %c0_2] : memref<8x256xf32, #tpu.memory_space<vmem>>, vector<1x256xf32>
    tpu.vector_store %arg6[%c1, %c0_2], %2 {strides = array<i32>} : memref<8x256xf32, #tpu.memory_space<vmem>>, vector<1x256xf32>,
    %c0_3 = arith.constant 0 : index
    %c0_4 = arith.constant 0 : index
    %4 = vector.load %arg1[%c0_3, %c0_4] : memref<2x256xf32, #tpu.memory_space<vmem>>, vector<1x256xf32>
    %c1_5 = arith.constant 1 : index
    %c0_6 = arith.constant 0 : index
    %5 = vector.load %arg1[%c1_5, %c0_6] : memref<2x256xf32, #tpu.memory_space<vmem>>, vector<1x256xf32>
    %cst_7 = arith.constant 1.000000e+00 : f32
    %6 = vector.broadcast %cst_7 : f32 to vector<1x256xf32>
    %c0_8 = arith.constant 0 : index
    %c0_9 = arith.constant 0 : index
    %7 = vector.load %arg2[%c0_8, %c0_9] : memref<128x128xf32, #tpu.memory_space<vmem>>, vector<32x8xf32>
    %c0_10 = arith.constant 0 : index
    %c0_11 = arith.constant 0 : index
    %8 = vector.load %arg3[%c0_10, %c0_11] : memref<128x128xf32, #tpu.memory_space<vmem>>, vector<32x32xf32>
    %c0_12 = arith.constant 0 : index
    %c32 = arith.constant 32 : index
    %9 = vector.load %arg3[%c0_12, %c32] : memref<128x128xf32, #tpu.memory_space<vmem>>, vector<32x1xf32>
    %c0_13 = arith.constant 0 : index
    %c0_14 = arith.constant 0 : index
    %10 = vector.load %arg4[%c0_13, %c0_14] : memref<8x128xf32, #tpu.memory_space<vmem>>, vector<2x32xf32>
    %c0_15 = arith.constant 0 : index
    %c32_16 = arith.constant 32 : index
    %11 = vector.load %arg4[%c0_15, %c32_16] : memref<8x128xf32, #tpu.memory_space<vmem>>, vector<2x1xf32>
    %c0_17 = arith.constant 0 : index
    %c0_18 = arith.constant 0 : index
    %12 = vector.load %arg6[%c0_17, %c0_18] : memref<8x256xf32, #tpu.memory_space<vmem>>, vector<1x256xf32>
    tpu.vector_store %arg6[%c0_17, %c0_18], %5 {strides = array<i32>} : memref<8x256xf32, #tpu.memory_space<vmem>>, vector<1x256xf32>,
    %c0_19 = arith.constant 0 : index
    %c0_20 = arith.constant 0 : index
    %13 = vector.load %arg6[%c0_19, %c0_20] : memref<8x256xf32, #tpu.memory_space<vmem>>, vector<8x256xf32>
    %cst_21 = arith.constant dense<0.000000e+00> : vector<32x256xf32>
    %14 = tpu.matmul %7, %13, %cst_21 {dimension_numbers = #tpu.dot_dimension_numbers<[1], [0], [0], [1], [0, 0, 1, 1], [], []>} : vector<32x8xf32>, vector<8x256xf32>, vector<32x256xf32> -> vector<32x256xf32>
    %cst_22 = arith.constant 0.000000e+00 : f32
    %15 = vector.broadcast %cst_22 : f32 to vector<32x256xf32>
    %16 = arith.maximumf %14, %15 : vector<32x256xf32>
    %cst_23 = arith.constant dense<0.000000e+00> : vector<32x256xf32>
    %17 = tpu.matmul %8, %16, %cst_23 {dimension_numbers = #tpu.dot_dimension_numbers<[1], [0], [0], [1], [0, 0, 1, 1], [], []>} : vector<32x32xf32>, vector<32x256xf32>, vector<32x256xf32> -> vector<32x256xf32>
    %18 = vector.broadcast %9 : vector<32x1xf32> to vector<32x256xf32>
    %19 = arith.addf %17, %18 : vector<32x256xf32>
    %cst_24 = arith.constant 0.000000e+00 : f32
    %20 = vector.broadcast %cst_24 : f32 to vector<32x256xf32>
    %21 = arith.maximumf %19, %20 : vector<32x256xf32>
    %cst_25 = arith.constant dense<0.000000e+00> : vector<2x256xf32>
    %22 = tpu.matmul %10, %21, %cst_25 {dimension_numbers = #tpu.dot_dimension_numbers<[1], [0], [0], [1], [0, 0, 1, 1], [], []>} : vector<2x32xf32>, vector<32x256xf32>, vector<2x256xf32> -> vector<2x256xf32>
    %23 = vector.broadcast %11 : vector<2x1xf32> to vector<2x256xf32>
    %24 = arith.addf %22, %23 : vector<2x256xf32>
    %25 = vector.extract_strided_slice %24 {offsets = [0, 0], sizes = [1, 256], strides = [1, 1]} : vector<2x256xf32> to vector<1x256xf32>
    %26 = vector.extract_strided_slice %24 {offsets = [1, 0], sizes = [1, 256], strides = [1, 1]} : vector<2x256xf32> to vector<1x256xf32>
    %27 = arith.mulf %4, %25 : vector<1x256xf32>
    %28 = arith.addf %27, %26 : vector<1x256xf32>
    %29 = arith.mulf %6, %25 : vector<1x256xf32>
    %c32_26 = arith.constant 32 : index
    %c0_27 = arith.constant 0 : index
    %30 = vector.load %arg2[%c32_26, %c0_27] : memref<128x128xf32, #tpu.memory_space<vmem>>, vector<32x8xf32>
    %c32_28 = arith.constant 32 : index
    %c0_29 = arith.constant 0 : index
    %31 = vector.load %arg3[%c32_28, %c0_29] : memref<128x128xf32, #tpu.memory_space<vmem>>, vector<32x32xf32>
    %c32_30 = arith.constant 32 : index
    %c32_31 = arith.constant 32 : index
    %32 = vector.load %arg3[%c32_30, %c32_31] : memref<128x128xf32, #tpu.memory_space<vmem>>, vector<32x1xf32>
    %c2 = arith.constant 2 : index
    %c0_32 = arith.constant 0 : index
    %33 = vector.load %arg4[%c2, %c0_32] : memref<8x128xf32, #tpu.memory_space<vmem>>, vector<2x32xf32>
    %c2_33 = arith.constant 2 : index
    %c32_34 = arith.constant 32 : index
    %34 = vector.load %arg4[%c2_33, %c32_34] : memref<8x128xf32, #tpu.memory_space<vmem>>, vector<2x1xf32>
    %c0_35 = arith.constant 0 : index
    %c0_36 = arith.constant 0 : index
    %35 = vector.load %arg6[%c0_35, %c0_36] : memref<8x256xf32, #tpu.memory_space<vmem>>, vector<1x256xf32>
    tpu.vector_store %arg6[%c0_35, %c0_36], %28 {strides = array<i32>} : memref<8x256xf32, #tpu.memory_space<vmem>>, vector<1x256xf32>,
    %c0_37 = arith.constant 0 : index
    %c0_38 = arith.constant 0 : index
    %36 = vector.load %arg6[%c0_37, %c0_38] : memref<8x256xf32, #tpu.memory_space<vmem>>, vector<8x256xf32>
    %cst_39 = arith.constant dense<0.000000e+00> : vector<32x256xf32>
    %37 = tpu.matmul %30, %36, %cst_39 {dimension_numbers = #tpu.dot_dimension_numbers<[1], [0], [0], [1], [0, 0, 1, 1], [], []>} : vector<32x8xf32>, vector<8x256xf32>, vector<32x256xf32> -> vector<32x256xf32>
    %cst_40 = arith.constant 0.000000e+00 : f32
    %38 = vector.broadcast %cst_40 : f32 to vector<32x256xf32>
    %39 = arith.maximumf %37, %38 : vector<32x256xf32>
    %cst_41 = arith.constant dense<0.000000e+00> : vector<32x256xf32>
    %40 = tpu.matmul %31, %39, %cst_41 {dimension_numbers = #tpu.dot_dimension_numbers<[1], [0], [0], [1], [0, 0, 1, 1], [], []>} : vector<32x32xf32>, vector<32x256xf32>, vector<32x256xf32> -> vector<32x256xf32>
    %41 = vector.broadcast %32 : vector<32x1xf32> to vector<32x256xf32>
    %42 = arith.addf %40, %41 : vector<32x256xf32>
    %cst_42 = arith.constant 0.000000e+00 : f32
    %43 = vector.broadcast %cst_42 : f32 to vector<32x256xf32>
    %44 = arith.maximumf %42, %43 : vector<32x256xf32>
    %cst_43 = arith.constant dense<0.000000e+00> : vector<2x256xf32>
    %45 = tpu.matmul %33, %44, %cst_43 {dimension_numbers = #tpu.dot_dimension_numbers<[1], [0], [0], [1], [0, 0, 1, 1], [], []>} : vector<2x32xf32>, vector<32x256xf32>, vector<2x256xf32> -> vector<2x256xf32>
    %46 = vector.broadcast %34 : vector<2x1xf32> to vector<2x256xf32>
    %47 = arith.addf %45, %46 : vector<2x256xf32>
    %48 = vector.extract_strided_slice %47 {offsets = [0, 0], sizes = [1, 256], strides = [1, 1]} : vector<2x256xf32> to vector<1x256xf32>
    %49 = vector.extract_strided_slice %47 {offsets = [1, 0], sizes = [1, 256], strides = [1, 1]} : vector<2x256xf32> to vector<1x256xf32>
    %50 = arith.mulf %5, %48 : vector<1x256xf32>
    %51 = arith.addf %50, %49 : vector<1x256xf32>
    %52 = arith.mulf %29, %48 : vector<1x256xf32>
    %c64 = arith.constant 64 : index
    %c0_44 = arith.constant 0 : index
    %53 = vector.load %arg2[%c64, %c0_44] : memref<128x128xf32, #tpu.memory_space<vmem>>, vector<32x8xf32>
    %c64_45 = arith.constant 64 : index
    %c0_46 = arith.constant 0 : index
    %54 = vector.load %arg3[%c64_45, %c0_46] : memref<128x128xf32, #tpu.memory_space<vmem>>, vector<32x32xf32>
    %c64_47 = arith.constant 64 : index
    %c32_48 = arith.constant 32 : index
    %55 = vector.load %arg3[%c64_47, %c32_48] : memref<128x128xf32, #tpu.memory_space<vmem>>, vector<32x1xf32>
    %c4 = arith.constant 4 : index
    %c0_49 = arith.constant 0 : index
    %56 = vector.load %arg4[%c4, %c0_49] : memref<8x128xf32, #tpu.memory_space<vmem>>, vector<2x32xf32>
    %c4_50 = arith.constant 4 : index
    %c32_51 = arith.constant 32 : index
    %57 = vector.load %arg4[%c4_50, %c32_51] : memref<8x128xf32, #tpu.memory_space<vmem>>, vector<2x1xf32>
    %c0_52 = arith.constant 0 : index
    %c0_53 = arith.constant 0 : index
    %58 = vector.load %arg6[%c0_52, %c0_53] : memref<8x256xf32, #tpu.memory_space<vmem>>, vector<1x256xf32>
    tpu.vector_store %arg6[%c0_52, %c0_53], %51 {strides = array<i32>} : memref<8x256xf32, #tpu.memory_space<vmem>>, vector<1x256xf32>,
    %c0_54 = arith.constant 0 : index
    %c0_55 = arith.constant 0 : index
    %59 = vector.load %arg6[%c0_54, %c0_55] : memref<8x256xf32, #tpu.memory_space<vmem>>, vector<8x256xf32>
    %cst_56 = arith.constant dense<0.000000e+00> : vector<32x256xf32>
    %60 = tpu.matmul %53, %59, %cst_56 {dimension_numbers = #tpu.dot_dimension_numbers<[1], [0], [0], [1], [0, 0, 1, 1], [], []>} : vector<32x8xf32>, vector<8x256xf32>, vector<32x256xf32> -> vector<32x256xf32>
    %cst_57 = arith.constant 0.000000e+00 : f32
    %61 = vector.broadcast %cst_57 : f32 to vector<32x256xf32>
    %62 = arith.maximumf %60, %61 : vector<32x256xf32>
    %cst_58 = arith.constant dense<0.000000e+00> : vector<32x256xf32>
    %63 = tpu.matmul %54, %62, %cst_58 {dimension_numbers = #tpu.dot_dimension_numbers<[1], [0], [0], [1], [0, 0, 1, 1], [], []>} : vector<32x32xf32>, vector<32x256xf32>, vector<32x256xf32> -> vector<32x256xf32>
    %64 = vector.broadcast %55 : vector<32x1xf32> to vector<32x256xf32>
    %65 = arith.addf %63, %64 : vector<32x256xf32>
    %cst_59 = arith.constant 0.000000e+00 : f32
    %66 = vector.broadcast %cst_59 : f32 to vector<32x256xf32>
    %67 = arith.maximumf %65, %66 : vector<32x256xf32>
    %cst_60 = arith.constant dense<0.000000e+00> : vector<2x256xf32>
    %68 = tpu.matmul %56, %67, %cst_60 {dimension_numbers = #tpu.dot_dimension_numbers<[1], [0], [0], [1], [0, 0, 1, 1], [], []>} : vector<2x32xf32>, vector<32x256xf32>, vector<2x256xf32> -> vector<2x256xf32>
    %69 = vector.broadcast %57 : vector<2x1xf32> to vector<2x256xf32>
    %70 = arith.addf %68, %69 : vector<2x256xf32>
    %71 = vector.extract_strided_slice %70 {offsets = [0, 0], sizes = [1, 256], strides = [1, 1]} : vector<2x256xf32> to vector<1x256xf32>
    %72 = vector.extract_strided_slice %70 {offsets = [1, 0], sizes = [1, 256], strides = [1, 1]} : vector<2x256xf32> to vector<1x256xf32>
    %73 = arith.mulf %28, %71 : vector<1x256xf32>
    %74 = arith.addf %73, %72 : vector<1x256xf32>
    %75 = arith.mulf %52, %71 : vector<1x256xf32>
    %c96 = arith.constant 96 : index
    %c0_61 = arith.constant 0 : index
    %76 = vector.load %arg2[%c96, %c0_61] : memref<128x128xf32, #tpu.memory_space<vmem>>, vector<32x8xf32>
    %c96_62 = arith.constant 96 : index
    %c0_63 = arith.constant 0 : index
    %77 = vector.load %arg3[%c96_62, %c0_63] : memref<128x128xf32, #tpu.memory_space<vmem>>, vector<32x32xf32>
    %c96_64 = arith.constant 96 : index
    %c32_65 = arith.constant 32 : index
    %78 = vector.load %arg3[%c96_64, %c32_65] : memref<128x128xf32, #tpu.memory_space<vmem>>, vector<32x1xf32>
    %c6 = arith.constant 6 : index
    %c0_66 = arith.constant 0 : index
    %79 = vector.load %arg4[%c6, %c0_66] : memref<8x128xf32, #tpu.memory_space<vmem>>, vector<2x32xf32>
    %c6_67 = arith.constant 6 : index
    %c32_68 = arith.constant 32 : index
    %80 = vector.load %arg4[%c6_67, %c32_68] : memref<8x128xf32, #tpu.memory_space<vmem>>, vector<2x1xf32>
    %c0_69 = arith.constant 0 : index
    %c0_70 = arith.constant 0 : index
    %81 = vector.load %arg6[%c0_69, %c0_70] : memref<8x256xf32, #tpu.memory_space<vmem>>, vector<1x256xf32>
    tpu.vector_store %arg6[%c0_69, %c0_70], %74 {strides = array<i32>} : memref<8x256xf32, #tpu.memory_space<vmem>>, vector<1x256xf32>,
    %c0_71 = arith.constant 0 : index
    %c0_72 = arith.constant 0 : index
    %82 = vector.load %arg6[%c0_71, %c0_72] : memref<8x256xf32, #tpu.memory_space<vmem>>, vector<8x256xf32>
    %cst_73 = arith.constant dense<0.000000e+00> : vector<32x256xf32>
    %83 = tpu.matmul %76, %82, %cst_73 {dimension_numbers = #tpu.dot_dimension_numbers<[1], [0], [0], [1], [0, 0, 1, 1], [], []>} : vector<32x8xf32>, vector<8x256xf32>, vector<32x256xf32> -> vector<32x256xf32>
    %cst_74 = arith.constant 0.000000e+00 : f32
    %84 = vector.broadcast %cst_74 : f32 to vector<32x256xf32>
    %85 = arith.maximumf %83, %84 : vector<32x256xf32>
    %cst_75 = arith.constant dense<0.000000e+00> : vector<32x256xf32>
    %86 = tpu.matmul %77, %85, %cst_75 {dimension_numbers = #tpu.dot_dimension_numbers<[1], [0], [0], [1], [0, 0, 1, 1], [], []>} : vector<32x32xf32>, vector<32x256xf32>, vector<32x256xf32> -> vector<32x256xf32>
    %87 = vector.broadcast %78 : vector<32x1xf32> to vector<32x256xf32>
    %88 = arith.addf %86, %87 : vector<32x256xf32>
    %cst_76 = arith.constant 0.000000e+00 : f32
    %89 = vector.broadcast %cst_76 : f32 to vector<32x256xf32>
    %90 = arith.maximumf %88, %89 : vector<32x256xf32>
    %cst_77 = arith.constant dense<0.000000e+00> : vector<2x256xf32>
    %91 = tpu.matmul %79, %90, %cst_77 {dimension_numbers = #tpu.dot_dimension_numbers<[1], [0], [0], [1], [0, 0, 1, 1], [], []>} : vector<2x32xf32>, vector<32x256xf32>, vector<2x256xf32> -> vector<2x256xf32>
    %92 = vector.broadcast %80 : vector<2x1xf32> to vector<2x256xf32>
    %93 = arith.addf %91, %92 : vector<2x256xf32>
    %94 = vector.extract_strided_slice %93 {offsets = [0, 0], sizes = [1, 256], strides = [1, 1]} : vector<2x256xf32> to vector<1x256xf32>
    %95 = vector.extract_strided_slice %93 {offsets = [1, 0], sizes = [1, 256], strides = [1, 1]} : vector<2x256xf32> to vector<1x256xf32>
    %96 = arith.mulf %51, %94 : vector<1x256xf32>
    %97 = arith.addf %96, %95 : vector<1x256xf32>
    %98 = arith.mulf %75, %94 : vector<1x256xf32>
    %c0_78 = arith.constant 0 : index
    %c0_79 = arith.constant 0 : index
    %99 = vector.load %arg5[%c0_78, %c0_79] : memref<3x256xf32, #tpu.memory_space<vmem>>, vector<1x256xf32>
    tpu.vector_store %arg5[%c0_78, %c0_79], %74 {strides = array<i32>} : memref<3x256xf32, #tpu.memory_space<vmem>>, vector<1x256xf32>,
    %c1_80 = arith.constant 1 : index
    %c0_81 = arith.constant 0 : index
    %100 = vector.load %arg5[%c1_80, %c0_81] : memref<3x256xf32, #tpu.memory_space<vmem>>, vector<1x256xf32>
    tpu.vector_store %arg5[%c1_80, %c0_81], %97 {strides = array<i32>} : memref<3x256xf32, #tpu.memory_space<vmem>>, vector<1x256xf32>,
    %101 = math.absf %98 : vector<1x256xf32>
    %102 = math.log %101 : vector<1x256xf32>
    %c2_82 = arith.constant 2 : index
    %c0_83 = arith.constant 0 : index
    %103 = vector.load %arg5[%c2_82, %c0_83] : memref<3x256xf32, #tpu.memory_space<vmem>>, vector<1x256xf32>
    tpu.vector_store %arg5[%c2_82, %c0_83], %102 {strides = array<i32>} : memref<3x256xf32, #tpu.memory_space<vmem>>, vector<1x256xf32>,
    return
  }
  func.func @transform_0(%arg0: i32) -> (i32, i32) {
    %c0_i32 = arith.constant 0 : i32
    %c0_i32_0 = arith.constant 0 : i32
    return %c0_i32, %arg0 : i32, i32
  }
  func.func @transform_1(%arg0: i32) -> (i32, i32) {
    %c0_i32 = arith.constant 0 : i32
    %c0_i32_0 = arith.constant 0 : i32
    %c0_i32_1 = arith.constant 0 : i32
    return %c0_i32, %c0_i32_0 : i32, i32
  }
  func.func @transform_2(%arg0: i32) -> (i32, i32) {
    %c0_i32 = arith.constant 0 : i32
    %c0_i32_0 = arith.constant 0 : i32
    %c0_i32_1 = arith.constant 0 : i32
    return %c0_i32, %c0_i32_0 : i32, i32
  }
  func.func @transform_3(%arg0: i32) -> (i32, i32) {
    %c0_i32 = arith.constant 0 : i32
    %c0_i32_0 = arith.constant 0 : i32
    %c0_i32_1 = arith.constant 0 : i32
    return %c0_i32, %c0_i32_0 : i32, i32
  }
  func.func @transform_4(%arg0: i32) -> (i32, i32) {
    %c0_i32 = arith.constant 0 : i32
    %c0_i32_0 = arith.constant 0 : i32
    return %c0_i32, %arg0 : i32, i32
  }
}

</mosaic_0001>

<llo_original>
// kernel: tpu_custom_call.1
$region0: #{tpu_custom_call.1}
  #allocation0 [shape = 'u32[]', space=smem, size = 0x4, offset = 0x4, fixed_abs, tag = 'smem constant byte address 0x4 - core index']
  #allocation1 [shape = 'u32[144,128]{1,0:T(1,128)}', space=vmem, size = 0x12000, scoped, tag = 'internal scratch']
  #allocation2 [shape = 'f32[8,256]{1,0:T(8,128)}', space=vmem, size = 0x2000, scoped, tag = 'scratch operand']
  %s0 = inlined_call_operand.hbm [shape: f32[2,512], index: 0, kind: input, shape index: {}]
  %s1 = inlined_call_operand.hbm [shape: f32[128,128], index: 1, kind: input, shape index: {}]
  %s2 = inlined_call_operand.hbm [shape: f32[128,128], index: 2, kind: input, shape index: {}]
  %s3 = inlined_call_operand.vmem [shape: f32[8,128], index: 3, kind: input, shape index: {}]
  %s4 = inlined_call_operand.hbm [shape: f32[3,512], index: 4, kind: output, shape index: {}]
  %s5 = sld [smem:[#allocation0]]
  $region61: #{tpu_custom_call.1} parent=0
    _
  %s7 = ssub.s32 1, %s5
  %s8 = scalar_select 0, %s7, %s5
  $region1: #{tpu_custom_call.1} parent=0
    #allocation3 [shape = 'u8[4096]{0}', space=vmem, size = 0x1000, scoped, tag = 'input window, operand 0']
    #allocation4 [shape = 's32[2]{0}', space=sflag, size = 0x8, scoped, tag = 'scoped memory for tpu_custom_call.1']
    #allocation5 [shape = 's32[2]{0}', space=sflag, size = 0x8, scoped, tag = 'scoped memory for tpu_custom_call.1']
    #allocation6 [shape = 'u8[65536]{0}', space=vmem, size = 0x10000, scoped, tag = 'input window, operand 1, single buffered']
    #allocation7 [shape = 's32[1]{0}', space=sflag, size = 0x4, scoped, tag = 'scoped memory for tpu_custom_call.1']
    #allocation8 [shape = 'u8[65536]{0}', space=vmem, size = 0x10000, scoped, tag = 'input window, operand 2, single buffered']
    #allocation9 [shape = 'u8[8192]{0}', space=vmem, size = 0x2000, scoped, tag = 'output window, operand 0']
    %9 = vsyncpa [#allocation4], 0
    %s10 = scalar_lea.sflag [#allocation4], 1
    %11 = vsyncpa %s10, 0
    %12 = vsyncpa [#allocation7], 0
    %13 = vsyncpa [#allocation5], 0
    %s14 = scalar_lea.sflag [#allocation5], 1
    %15 = vsyncpa %s14, 0
    loop: start=0, step=1, limit=4
    $region2: #{tpu_custom_call.1} parent=1 // loop_pre_header
      _
    $region3: #{tpu_custom_call.1} parent=1 // loop_header
      %s17 = sphi 0, %s21
      %p18 = scmp.ge.s32.totalorder %s17, 4
      %s27 = sphi 0, %s29
      %s30 = sphi 0, %s27
      %s31 = sphi 0, %s30
      %s47 = sphi 0, %s31
      %s51 = sphi 0, %s51
      %s53 = sphi 0, %s51
      %s54 = sphi 0, %s53
      %s68 = sphi 0, %s54
      %s72 = sphi 0, %s72
      %s74 = sphi 0, %s72
      %s75 = sphi 0, %s74
      %s89 = sphi 0, %s75
      %s93 = sphi 0, %s93
      %s95 = sphi 0, %s93
      %s96 = sphi 0, %s95
      %s110 = sphi 0, %s96
      %s116 = sphi 0, %s118
      %s119 = sphi 0, %s116
      %s120 = sphi 0, %s119
      %s136 = sphi 0, %s120
    $region4: #{tpu_custom_call.1} parent=1 // loop_header_branch
      %20 = sbr.rel (%p18) target = $region8
    $region5: #{tpu_custom_call.1} parent=1 // loop_body
      %s22 = ssub.s32 %s17, 1
      %s23 = ssub.s32 %s17, 2
      %s24 = sadd.s32 %s17, 1
      %s25 = ssub.s32 %s17, %s24
      %p26 = scmp.eq.s32.totalorder %s25, 0
      %s28 = sadd.s32 %s27, 1
      %s29 = scalar_select %p26, %s27, %s28
      %p32 = pneg %p26
      %p33 = scmp.eq.s32.totalorder %s17, 1
      %p34 = por %p32, %p33
      %p35 = scmp.ne.s32.totalorder %s27, %s30
      %p36 = scmp.eq.s32.totalorder %s17, 0
      %p37 = por %p35, %p36
      %p38 = scmp.ne.s32.totalorder %s27, %s30
      %p39 = scmp.eq.s32.totalorder %s22, 1
      %p40 = por %p38, %p39
      %p41 = scmp.ne.s32.totalorder %s30, %s31
      %p42 = scmp.eq.s32.totalorder %s22, 0
      %p43 = por %p41, %p42
      %p44 = scmp.ne.s32.totalorder %s30, %s31
      %p45 = scmp.eq.s32.totalorder %s23, 1
      %p46 = por %p44, %p45
      %p48 = scmp.ne.s32.totalorder %s31, %s47
      %p49 = scmp.eq.s32.totalorder %s23, 0
      %p50 = por %p48, %p49
      %s52 = sadd.s32 %s51, 1
      %p55 = scmp.eq.s32.totalorder %s17, 1
      %p56 = scmp.ne.s32.totalorder %s51, %s53
      %p57 = scmp.eq.s32.totalorder %s17, 0
      %p58 = por %p56, %p57
      %p59 = scmp.ne.s32.totalorder %s51, %s53
      %p60 = scmp.eq.s32.totalorder %s22, 1
      %p61 = por %p59, %p60
      %p62 = scmp.ne.s32.totalorder %s53, %s54
      %p63 = scmp.eq.s32.totalorder %s22, 0
      %p64 = por %p62, %p63
      %p65 = scmp.ne.s32.totalorder %s53, %s54
      %p66 = scmp.eq.s32.totalorder %s23, 1
      %p67 = por %p65, %p66
      %p69 = scmp.ne.s32.totalorder %s54, %s68
      %p70 = scmp.eq.s32.totalorder %s23, 0
      %p71 = por %p69, %p70
      %s73 = sadd.s32 %s72, 1
      %p76 = scmp.eq.s32.totalorder %s17, 1
      %p77 = scmp.ne.s32.totalorder %s72, %s74
      %p78 = scmp.eq.s32.totalorder %s17, 0
      %p79 = por %p77, %p78
      %p80 = scmp.ne.s32.totalorder %s72, %s74
      %p81 = scmp.eq.s32.totalorder %s22, 1
      %p82 = por %p80, %p81
      %p83 = scmp.ne.s32.totalorder %s74, %s75
      %p84 = scmp.eq.s32.totalorder %s22, 0
      %p85 = por %p83, %p84
      %p86 = scmp.ne.s32.totalorder %s74, %s75
      %p87 = scmp.eq.s32.totalorder %s23, 1
      %p88 = por %p86, %p87
      %p90 = scmp.ne.s32.totalorder %s75, %s89
      %p91 = scmp.eq.s32.totalorder %s23, 0
      %p92 = por %p90, %p91
      %s94 = sadd.s32 %s93, 1
      %p97 = scmp.eq.s32.totalorder %s17, 1
      %p98 = scmp.ne.s32.totalorder %s93, %s95
      %p99 = scmp.eq.s32.totalorder %s17, 0
      %p100 = por %p98, %p99
      %p101 = scmp.ne.s32.totalorder %s93, %s95
      %p102 = scmp.eq.s32.totalorder %s22, 1
      %p103 = por %p101, %p102
      %p104 = scmp.ne.s32.totalorder %s95, %s96
      %p105 = scmp.eq.s32.totalorder %s22, 0
      %p106 = por %p104, %p105
      %p107 = scmp.ne.s32.totalorder %s95, %s96
      %p108 = scmp.eq.s32.totalorder %s23, 1
      %p109 = por %p107, %p108
      %p111 = scmp.ne.s32.totalorder %s96, %s110
      %p112 = scmp.eq.s32.totalorder %s23, 0
      %p113 = por %p111, %p112
      %s114 = ssub.s32 %s17, %s24
      %p115 = scmp.eq.s32.totalorder %s114, 0
      %s117 = sadd.s32 %s116, 1
      %s118 = scalar_select %p115, %s116, %s117
      %p121 = pneg %p115
      %p122 = scmp.eq.s32.totalorder %s17, 1
      %p123 = por %p121, %p122
      %p124 = scmp.ne.s32.totalorder %s116, %s119
      %p125 = scmp.eq.s32.totalorder %s17, 0
      %p126 = por %p124, %p125
      %p127 = scmp.ne.s32.totalorder %s116, %s119
      %p128 = scmp.eq.s32.totalorder %s22, 1
      %p129 = por %p127, %p128
      %p130 = scmp.ne.s32.totalorder %s119, %s120
      %p131 = scmp.eq.s32.totalorder %s22, 0
      %p132 = por %p130, %p131
      %p133 = scmp.ne.s32.totalorder %s119, %s120
      %p134 = scmp.eq.s32.totalorder %s23, 1
      %p135 = por %p133, %p134
      %p137 = scmp.ne.s32.totalorder %s120, %s136
      %p138 = scmp.eq.s32.totalorder %s23, 0
      %p139 = por %p137, %p138
      %p140 = scmp.le.s32.totalorder 1, %s17
      %p141 = scmp.lt.s32.totalorder %s17, 3
      %p142 = pnand %p140, %p141
      %p143 = pneg %p142
      // Predicated region
      $region9: #{tpu_custom_call.1} parent=5 // pred_check
        _
      $region10: #{tpu_custom_call.1} parent=5 // pred_check_branch
        %145 = sbr.rel (%p142) target = $region12
      $region11: #{tpu_custom_call.1} parent=5 // pred_region
        %s146 = ssub.s32 %s17, 1
        // Predicated region
        $region13: #{tpu_custom_call.1} parent=11 // pred_check
          %p147 = pneg %p64
        $region14: #{tpu_custom_call.1} parent=11 // pred_check_branch
          %149 = sbr.rel (%p147) target = $region16
        $region15: #{tpu_custom_call.1} parent=11 // pred_region
          %s151 = ssub.s32 2048, 2048
          %152 = vsyncadd [#allocation7], %s151
          %s153 = sshll.u32 [#allocation6], 4
          %s154 = int_to_ptr.vmem [resolvable:$true] %s153
          %159 = dma.hbm_to_vmem [thread:$0]  %s1, 2048, %s154, [#allocation7], 128, 128, 8
        $region16: #{tpu_custom_call.1} parent=11 // pred_fallthru
          _
        // Predicated region
        $region17: #{tpu_custom_call.1} parent=11 // pred_check
          %p160 = pneg %p85
        $region18: #{tpu_custom_call.1} parent=11 // pred_check_branch
          %162 = sbr.rel (%p160) target = $region20
        $region19: #{tpu_custom_call.1} parent=11 // pred_region
          %s164 = ssub.s32 2048, 2048
          %165 = vsyncadd [#allocation7], %s164
          %s166 = sshll.u32 [#allocation8], 4
          %s167 = int_to_ptr.vmem [resolvable:$true] %s166
          %172 = dma.hbm_to_vmem [thread:$0]  %s2, 2048, %s167, [#allocation7], 128, 128, 8
        $region20: #{tpu_custom_call.1} parent=11 // pred_fallthru
          _
        // Predicated region
        $region21: #{tpu_custom_call.1} parent=11 // pred_check
          %p173 = pneg %p106
        $region22: #{tpu_custom_call.1} parent=11 // pred_check_branch
          %175 = sbr.rel (%p173) target = $region24
        $region23: #{tpu_custom_call.1} parent=11 // pred_region
          _
        $region24: #{tpu_custom_call.1} parent=11 // pred_fallthru
          _
      $region12: #{tpu_custom_call.1} parent=5 // pred_fallthru
        _
      %p176 = scmp.lt.s32.totalorder %s17, 2
      // Predicated region
      $region25: #{tpu_custom_call.1} parent=5 // pred_check
        %p177 = pneg %p176
      $region26: #{tpu_custom_call.1} parent=5 // pred_check_branch
        %179 = sbr.rel (%p177) target = $region28
      $region27: #{tpu_custom_call.1} parent=5 // pred_region
        // Predicated region
        $region29: #{tpu_custom_call.1} parent=27 // pred_check
          %p180 = pneg %p37
        $region30: #{tpu_custom_call.1} parent=27 // pred_check_branch
          %182 = sbr.rel (%p180) target = $region32
        $region31: #{tpu_custom_call.1} parent=27 // pred_region
          %s183 = sand.u32 %s27, 1
          %s184 = scalar_lea.sflag [#allocation4], %s183
          %s185 = sand.u32 %s27, 1
          %s186 = smul.addr %s185, 4
          %s187 = scalar_lea.vmem [#allocation3], %s186
          %s188 = smul.u32 2, %s17
          %s190 = ssub.s32 64, 64
          %191 = vsyncadd %s184, %s190
          %s192 = smul.addr %s188, 32
          %s193 = scalar_lea.hbm %s0, %s192
          %s195 = sshll.u32 %s187, 4
          %s196 = int_to_ptr.vmem [resolvable:$true] %s195
          %198 = dma.hbm_to_vmem [thread:$0]  %s193, 64, %s196, %s184
        $region32: #{tpu_custom_call.1} parent=27 // pred_fallthru
          _
      $region28: #{tpu_custom_call.1} parent=5 // pred_fallthru
        _
      %p199 = scmp.le.s32.totalorder 1, %s17
      %p200 = scmp.lt.s32.totalorder %s17, 3
      %p201 = pnand %p199, %p200
      %p202 = pneg %p201
      // Predicated region
      $region33: #{tpu_custom_call.1} parent=5 // pred_check
        _
      $region34: #{tpu_custom_call.1} parent=5 // pred_check_branch
        %204 = sbr.rel (%p201) target = $region36
      $region35: #{tpu_custom_call.1} parent=5 // pred_region
        %s205 = ssub.s32 %s17, 1
        %s206 = sand.u32 %s30, 1
        %s207 = scalar_lea.sflag [#allocation4], %s206
        %s208 = sand.u32 %s30, 1
        %s209 = smul.addr %s208, 4
        %s210 = scalar_lea.vmem [#allocation3], %s209
        // Predicated region
        $region37: #{tpu_custom_call.1} parent=35 // pred_check
          %p211 = pneg %p43
        $region38: #{tpu_custom_call.1} parent=35 // pred_check_branch
          %213 = sbr.rel (%p211) target = $region40
        $region39: #{tpu_custom_call.1} parent=35 // pred_region
          %214 = dma.done %s207, 64
        $region40: #{tpu_custom_call.1} parent=35 // pred_fallthru
          _
        // Predicated region
        $region41: #{tpu_custom_call.1} parent=35 // pred_check
          %p215 = pneg %p64
        $region42: #{tpu_custom_call.1} parent=35 // pred_check_branch
          %217 = sbr.rel (%p215) target = $region44
        $region43: #{tpu_custom_call.1} parent=35 // pred_region
          %218 = dma.done [#allocation7], 2048
        $region44: #{tpu_custom_call.1} parent=35 // pred_fallthru
          _
        // Predicated region
        $region45: #{tpu_custom_call.1} parent=35 // pred_check
          %p219 = pneg %p85
        $region46: #{tpu_custom_call.1} parent=35 // pred_check_branch
          %221 = sbr.rel (%p219) target = $region48
        $region47: #{tpu_custom_call.1} parent=35 // pred_region
          %222 = dma.done [#allocation7], 2048
        $region48: #{tpu_custom_call.1} parent=35 // pred_fallthru
          _
        %s223 = sand.u32 %s30, 1
        %s224 = scalar_lea.sflag [#allocation4], %s223
        %s225 = sand.u32 %s30, 1
        %s226 = smul.addr %s225, 4
        %s227 = scalar_lea.vmem [#allocation3], %s226
        %p228 = pneg %p43
        %p229 = pneg %p40
        %p230 = pneg %p64
        %p231 = pneg %p61
        %p232 = pneg %p85
        %p233 = pneg %p82
        %p234 = pneg %p106
        %p235 = pneg %p103
        %p236 = pneg %p132
        %p237 = pneg %p129
        %s238 = sand.u32 %s119, 1
        %s239 = scalar_lea.sflag [#allocation5], %s238
        %s240 = sand.u32 %s119, 1
        %s241 = smul.addr %s240, 8
        %s242 = scalar_lea.vmem [#allocation9], %s241
        %s243 = smul.u32 2, %s22
        %s244 = smul.u32 2, %s22
        %245 = vst [vmem:[#allocation2] sm:$0xff] 0.0
        %246 = vst [vmem:[#allocation2 + $0x8] sm:$0xff] 0.0
        %v247 = vlaneseq
        %vm248 = vcmp.ge.s32.totalorder %v247, 0
        %vm249 = vcmp.lt.s32.totalorder %v247, 256
        %vm250 = vmand %vm248, %vm249
        %s251 = scalar_lea.vmem [#allocation2], 1
        %252 = vst.msk [vmem:[%s251] ss:$8 sm:$0x3] %vm250, 1.0
        %253 = vst.msk [vmem:[%s251] ss:$8 sm:$0x0] %vm250, 1.0
        %v254 = vld [vmem:[%s210] ss:$2 sm:$0x3]
        %s255 = scalar_lea.vmem %s210, 1 [#allocation3]
        %v256 = vld [vmem:[%s255] ss:$2 sm:$0x3]
        %v257 = vld [vmem:[#allocation6] sm:$0xff]
        %v258 = vld [vmem:[#allocation6 + $0x8] sm:$0xff]
        %v259 = vld [vmem:[#allocation6 + $0x10] sm:$0xff]
        %v260 = vld [vmem:[#allocation6 + $0x18] sm:$0xff]
        %v261 = vld [vmem:[#allocation8] sm:$0xff]
        %v262 = vld [vmem:[#allocation8 + $0x8] sm:$0xff]
        %v263 = vld [vmem:[#allocation8 + $0x10] sm:$0xff]
        %v264 = vld [vmem:[#allocation8 + $0x18] sm:$0xff]
        %v265 = vld [vmem:[%s3] sm:$0x3]
        %266 = vst.msk [vmem:[#allocation2] ss:$8 sm:$0x3] %vm250, %v256
        %267 = vst.msk [vmem:[#allocation2] ss:$8 sm:$0x0] %vm250, %v256
        %v268 = vld [vmem:[#allocation2] sm:$0xff]
        %v269 = vld [vmem:[#allocation2 + $0x8] sm:$0xff]
        %vm270 = vcmask 64512
        %v272 = vsel %vm270, %v257, 0
        %v275 = vsel %vm270, %v258, 0
        %v278 = vsel %vm270, %v259, 0
        %v281 = vsel %vm270, %v260, 0
        %283 = vmatprep.subr.mxu0 %v269
        %284 = vmatpush1.msra.mxu0 %v268
        %285 = vmatprep.subr.mxu0 0.0
        %286 = vmatpush1.msra.mxu0 0.0
        %287 = vmatprep.subr.mxu0 0.0
        %288 = vmatpush1.msra.mxu0 0.0
        %289 = vmatprep.subr.mxu0 0.0
        %290 = vmatpush1.msra.mxu0 0.0
        %291 = vmatprep.subr.mxu0 0.0
        %292 = vmatpush1.msra.mxu0 0.0
        %293 = vmatprep.subr.mxu0 0.0
        %294 = vmatpush1.msra.mxu0 0.0
        %295 = vmatprep.subr.mxu0 0.0
        %296 = vmatpush1.msra.mxu0 0.0
        %297 = vmatprep.subr.mxu0 0.0
        %298 = vmatpush1.msra.mxu0 0.0
        %299 = vmatprep.subr.mxu0 0.0
        %300 = vmatpush1.msra.mxu0 0.0
        %301 = vmatprep.subr.mxu0 0.0
        %302 = vmatpush1.msra.mxu0 0.0
        %303 = vmatprep.subr.mxu0 0.0
        %304 = vmatpush1.msra.mxu0 0.0
        %305 = vmatprep.subr.mxu0 0.0
        %306 = vmatpush1.msra.mxu0 0.0
        %307 = vmatprep.subr.mxu0 0.0
        %308 = vmatpush1.msra.mxu0 0.0
        %309 = vmatprep.subr.mxu0 0.0
        %310 = vmatpush1.msra.mxu0 0.0
        %311 = vmatprep.subr.mxu0 0.0
        %312 = vmatpush1.msra.mxu0 0.0
        %313 = vmatprep.subr.mxu0 0.0
        %314 = vmatpush1.msra.mxu0 0.0
        %315 = vmatprep.subr.mxu0 0.0
        %316 = vmatpush1.msra.mxu0 0.0
        %317 = vmatprep.subr.mxu0 0.0
        %318 = vmatpush1.msra.mxu0 0.0
        %319 = vmatprep.subr.mxu0 0.0
        %320 = vmatpush1.msra.mxu0 0.0
        %321 = vmatprep.subr.mxu0 0.0
        %322 = vmatpush1.msra.mxu0 0.0
        %323 = vmatprep.subr.mxu0 0.0
        %324 = vmatpush1.msra.mxu0 0.0
        %325 = vmatprep.subr.mxu0 0.0
        %326 = vmatpush1.msra.mxu0 0.0
        %327 = vmatprep.subr.mxu0 0.0
        %328 = vmatpush1.msra.mxu0 0.0
        %329 = vmatprep.subr.mxu0 0.0
        %330 = vmatpush1.msra.mxu0 0.0
        %331 = vmatprep.subr.mxu0 0.0
        %332 = vmatpush1.msra.mxu0 0.0
        %333 = vmatprep.subr.mxu0 0.0
        %334 = vmatpush1.msra.mxu0 0.0
        %335 = vmatprep.subr.mxu0 0.0
        %336 = vmatpush1.msra.mxu0 0.0
        %337 = vmatprep.subr.mxu0 0.0
        %338 = vmatpush1.msra.mxu0 0.0
        %339 = vmatprep.subr.mxu0 0.0
        %340 = vmatpush1.msra.mxu0 0.0
        %341 = vmatprep.subr.mxu0 0.0
        %342 = vmatpush1.msra.mxu0 0.0
        %343 = vmatprep.subr.mxu0 0.0
        %344 = vmatpush1.msra.mxu0 0.0
        %345 = vmatprep.subr.mxu0 0.0
        %346 = vmatpush1.msra.mxu0 0.0
        %347 = vmatprep.mubr.f32.mxu0 0.0
        %348 = vmatmul.mubr.f32.gmra.mrb[0].mxu0 %v272
        %v349 = vpop.f32.mrb[0].mxu0
        %v350 = vadd.f32 0.0, %v349
        %v351 = vpop.f32.mrb[0].mxu0
        %v352 = vadd.f32 0.0, %v351
        %353 = vmatprep.mubr.f32.mxu0 0.0
        %354 = vmatmul.mubr.f32.gmra.mrb[0].mxu0 %v275
        %v355 = vpop.f32.mrb[0].mxu0
        %v356 = vadd.f32 0.0, %v355
        %v357 = vpop.f32.mrb[0].mxu0
        %v358 = vadd.f32 0.0, %v357
        %359 = vmatprep.mubr.f32.mxu0 0.0
        %360 = vmatmul.mubr.f32.gmra.mrb[0].mxu0 %v278
        %v361 = vpop.f32.mrb[0].mxu0
        %v362 = vadd.f32 0.0, %v361
        %v363 = vpop.f32.mrb[0].mxu0
        %v364 = vadd.f32 0.0, %v363
        %365 = vmatprep.mubr.f32.mxu0 0.0
        %366 = vmatmul.mubr.f32.gmra.mrb[0].mxu0 %v281
        %v367 = vpop.f32.mrb[0].mxu0
        %v368 = vadd.f32 0.0, %v367
        %v369 = vpop.f32.mrb[0].mxu0
        %v370 = vadd.f32 0.0, %v369
        %371 = vdwg.mxu0
        %v372 = vmax.f32 %v350, 0.0
        %v373 = vmax.f32 %v352, 0.0
        %v374 = vmax.f32 %v356, 0.0
        %v375 = vmax.f32 %v358, 0.0
        %v376 = vmax.f32 %v362, 0.0
        %v377 = vmax.f32 %v364, 0.0
        %v378 = vmax.f32 %v368, 0.0
        %v379 = vmax.f32 %v370, 0.0
        %381 = vset.pattern.permute.xlu0 32
        %382 = vperm.xlu0 %381, %v261
        %v383 = vpop.permute.xlu0 %382
        %386 = vset.pattern.permute.xlu0 32
        %387 = vperm.xlu0 %386, %v262
        %v388 = vpop.permute.xlu0 %387
        %391 = vset.pattern.permute.xlu0 32
        %392 = vperm.xlu0 %391, %v263
        %v393 = vpop.permute.xlu0 %392
        %396 = vset.pattern.permute.xlu0 32
        %397 = vperm.xlu0 %396, %v264
        %v398 = vpop.permute.xlu0 %397
        %vm400 = vcmask 261120
        %v401 = vsel %vm400, %v261, 0
        %v403 = vsel %vm400, %v262, 0
        %v405 = vsel %vm400, %v263, 0
        %v407 = vsel %vm400, %v264, 0
        %409 = vmatprep.subr.mxu0 %v373
        %410 = vmatpush1.msra.mxu0 %v372
        %411 = vmatprep.subr.mxu0 %v375
        %412 = vmatpush1.msra.mxu0 %v374
        %413 = vmatprep.subr.mxu0 %v377
        %414 = vmatpush1.msra.mxu0 %v376
        %415 = vmatprep.subr.mxu0 %v379
        %416 = vmatpush1.msra.mxu0 %v378
        %417 = vmatprep.subr.mxu0 0.0
        %418 = vmatpush1.msra.mxu0 0.0
        %419 = vmatprep.subr.mxu0 0.0
        %420 = vmatpush1.msra.mxu0 0.0
        %421 = vmatprep.subr.mxu0 0.0
        %422 = vmatpush1.msra.mxu0 0.0
        %423 = vmatprep.subr.mxu0 0.0
        %424 = vmatpush1.msra.mxu0 0.0
        %425 = vmatprep.subr.mxu0 0.0
        %426 = vmatpush1.msra.mxu0 0.0
        %427 = vmatprep.subr.mxu0 0.0
        %428 = vmatpush1.msra.mxu0 0.0
        %429 = vmatprep.subr.mxu0 0.0
        %430 = vmatpush1.msra.mxu0 0.0
        %431 = vmatprep.subr.mxu0 0.0
        %432 = vmatpush1.msra.mxu0 0.0
        %433 = vmatprep.subr.mxu0 0.0
        %434 = vmatpush1.msra.mxu0 0.0
        %435 = vmatprep.subr.mxu0 0.0
        %436 = vmatpush1.msra.mxu0 0.0
        %437 = vmatprep.subr.mxu0 0.0
        %438 = vmatpush1.msra.mxu0 0.0
        %439 = vmatprep.subr.mxu0 0.0
        %440 = vmatpush1.msra.mxu0 0.0
        %441 = vmatprep.subr.mxu0 0.0
        %442 = vmatpush1.msra.mxu0 0.0
        %443 = vmatprep.subr.mxu0 0.0
        %444 = vmatpush1.msra.mxu0 0.0
        %445 = vmatprep.subr.mxu0 0.0
        %446 = vmatpush1.msra.mxu0 0.0
        %447 = vmatprep.subr.mxu0 0.0
        %448 = vmatpush1.msra.mxu0 0.0
        %449 = vmatprep.subr.mxu0 0.0
        %450 = vmatpush1.msra.mxu0 0.0
        %451 = vmatprep.subr.mxu0 0.0
        %452 = vmatpush1.msra.mxu0 0.0
        %453 = vmatprep.subr.mxu0 0.0
        %454 = vmatpush1.msra.mxu0 0.0
        %455 = vmatprep.subr.mxu0 0.0
        %456 = vmatpush1.msra.mxu0 0.0
        %457 = vmatprep.subr.mxu0 0.0
        %458 = vmatpush1.msra.mxu0 0.0
        %459 = vmatprep.subr.mxu0 0.0
        %460 = vmatpush1.msra.mxu0 0.0
        %461 = vmatprep.subr.mxu0 0.0
        %462 = vmatpush1.msra.mxu0 0.0
        %463 = vmatprep.subr.mxu0 0.0
        %464 = vmatpush1.msra.mxu0 0.0
        %465 = vmatprep.subr.mxu0 0.0
        %466 = vmatpush1.msra.mxu0 0.0
        %467 = vmatprep.subr.mxu0 0.0
        %468 = vmatpush1.msra.mxu0 0.0
        %469 = vmatprep.subr.mxu0 0.0
        %470 = vmatpush1.msra.mxu0 0.0
        %471 = vmatprep.subr.mxu0 0.0
        %472 = vmatpush1.msra.mxu0 0.0
        %473 = vmatprep.mubr.f32.mxu0 0.0
        %474 = vmatmul.mubr.f32.gmra.mrb[0].mxu0 %v401
        %v475 = vpop.f32.mrb[0].mxu0
        %v476 = vadd.f32 %v383, %v475
        %v477 = vpop.f32.mrb[0].mxu0
        %v478 = vadd.f32 %v383, %v477
        %479 = vmatprep.mubr.f32.mxu0 0.0
        %480 = vmatmul.mubr.f32.gmra.mrb[0].mxu0 %v403
        %v481 = vpop.f32.mrb[0].mxu0
        %v482 = vadd.f32 %v388, %v481
        %v483 = vpop.f32.mrb[0].mxu0
        %v484 = vadd.f32 %v388, %v483
        %485 = vmatprep.mubr.f32.mxu0 0.0
        %486 = vmatmul.mubr.f32.gmra.mrb[0].mxu0 %v405
        %v487 = vpop.f32.mrb[0].mxu0
        %v488 = vadd.f32 %v393, %v487
        %v489 = vpop.f32.mrb[0].mxu0
        %v490 = vadd.f32 %v393, %v489
        %491 = vmatprep.mubr.f32.mxu0 0.0
        %492 = vmatmul.mubr.f32.gmra.mrb[0].mxu0 %v407
        %v493 = vpop.f32.mrb[0].mxu0
        %v494 = vadd.f32 %v398, %v493
        %v495 = vpop.f32.mrb[0].mxu0
        %v496 = vadd.f32 %v398, %v495
        %497 = vdwg.mxu0
        %v498 = vmax.f32 %v476, 0.0
        %v499 = vmax.f32 %v478, 0.0
        %v500 = vmax.f32 %v482, 0.0
        %v501 = vmax.f32 %v484, 0.0
        %v502 = vmax.f32 %v488, 0.0
        %v503 = vmax.f32 %v490, 0.0
        %v504 = vmax.f32 %v494, 0.0
        %v505 = vmax.f32 %v496, 0.0
        %507 = vset.pattern.permute.xlu0 32
        %508 = vperm.xlu0 %507, %v265
        %v509 = vpop.permute.xlu0 %508
        %v511 = vsel %vm400, %v265, 0
        %513 = vmatprep.subr.mxu0 %v499
        %514 = vmatpush1.msra.mxu0 %v498
        %515 = vmatprep.subr.mxu0 %v501
        %516 = vmatpush1.msra.mxu0 %v500
        %517 = vmatprep.subr.mxu0 %v503
        %518 = vmatpush1.msra.mxu0 %v502
        %519 = vmatprep.subr.mxu0 %v505
        %520 = vmatpush1.msra.mxu0 %v504
        %521 = vmatprep.subr.mxu0 0.0
        %522 = vmatpush1.msra.mxu0 0.0
        %523 = vmatprep.subr.mxu0 0.0
        %524 = vmatpush1.msra.mxu0 0.0
        %525 = vmatprep.subr.mxu0 0.0
        %526 = vmatpush1.msra.mxu0 0.0
        %527 = vmatprep.subr.mxu0 0.0
        %528 = vmatpush1.msra.mxu0 0.0
        %529 = vmatprep.subr.mxu0 0.0
        %530 = vmatpush1.msra.mxu0 0.0
        %531 = vmatprep.subr.mxu0 0.0
        %532 = vmatpush1.msra.mxu0 0.0
        %533 = vmatprep.subr.mxu0 0.0
        %534 = vmatpush1.msra.mxu0 0.0
        %535 = vmatprep.subr.mxu0 0.0
        %536 = vmatpush1.msra.mxu0 0.0
        %537 = vmatprep.subr.mxu0 0.0
        %538 = vmatpush1.msra.mxu0 0.0
        %539 = vmatprep.subr.mxu0 0.0
        %540 = vmatpush1.msra.mxu0 0.0
        %541 = vmatprep.subr.mxu0 0.0
        %542 = vmatpush1.msra.mxu0 0.0
        %543 = vmatprep.subr.mxu0 0.0
        %544 = vmatpush1.msra.mxu0 0.0
        %545 = vmatprep.subr.mxu0 0.0
        %546 = vmatpush1.msra.mxu0 0.0
        %547 = vmatprep.subr.mxu0 0.0
        %548 = vmatpush1.msra.mxu0 0.0
        %549 = vmatprep.subr.mxu0 0.0
        %550 = vmatpush1.msra.mxu0 0.0
        %551 = vmatprep.subr.mxu0 0.0
        %552 = vmatpush1.msra.mxu0 0.0
        %553 = vmatprep.subr.mxu0 0.0
        %554 = vmatpush1.msra.mxu0 0.0
        %555 = vmatprep.subr.mxu0 0.0
        %556 = vmatpush1.msra.mxu0 0.0
        %557 = vmatprep.subr.mxu0 0.0
        %558 = vmatpush1.msra.mxu0 0.0
        %559 = vmatprep.subr.mxu0 0.0
        %560 = vmatpush1.msra.mxu0 0.0
        %561 = vmatprep.subr.mxu0 0.0
        %562 = vmatpush1.msra.mxu0 0.0
        %563 = vmatprep.subr.mxu0 0.0
        %564 = vmatpush1.msra.mxu0 0.0
        %565 = vmatprep.subr.mxu0 0.0
        %566 = vmatpush1.msra.mxu0 0.0
        %567 = vmatprep.subr.mxu0 0.0
        %568 = vmatpush1.msra.mxu0 0.0
        %569 = vmatprep.subr.mxu0 0.0
        %570 = vmatpush1.msra.mxu0 0.0
        %571 = vmatprep.subr.mxu0 0.0
        %572 = vmatpush1.msra.mxu0 0.0
        %573 = vmatprep.subr.mxu0 0.0
        %574 = vmatpush1.msra.mxu0 0.0
        %575 = vmatprep.subr.mxu0 0.0
        %576 = vmatpush1.msra.mxu0 0.0
        %577 = vmatprep.mubr.f32.mxu0 0.0
        %578 = vmatmul.mubr.f32.gmra.mrb[0].mxu0 %v511
        %v579 = vpop.f32.mrb[0].mxu0
        %v580 = vadd.f32 %v509, %v579
        %v581 = vpop.f32.mrb[0].mxu0
        %v582 = vadd.f32 %v509, %v581
        %583 = vdwg.mxu0
        %v586 = vcombine.low %v580, %v582
        %v588 = vunpack.c.l.s4 1966171168
        %v589 = vunpack.c.0.s8 %v588
        %v590 = vlaneseq
        %v591 = vshrl.u32 %v590, 7
        %v592 = vsub.s32 %v589, %v591
        %v593 = vrot.slane %v586, %v592
        %v595 = vunpack.c.l.s4 1966171168
        %v596 = vunpack.c.0.s8 %v595
        %v597 = vlaneseq
        %v598 = vshrl.u32 %v597, 7
        %v599 = vsub.s32 %v596, %v598
        %v600 = vrot.slane %v593, %v599
        %v602 = vmul.f32 %v254, %v600
        %v603 = vcombine.high %v593, %v593
        %v605 = vunpack.c.l.s4 1966171168
        %v606 = vunpack.c.0.s8 %v605
        %v607 = vlaneseq
        %v608 = vshrl.u32 %v607, 7
        %v609 = vsub.s32 %v606, %v608
        %v610 = vrot.slane %v603, %v609
        %v612 = vadd.f32 %v602, %v610
        %v613 = vld [vmem:[#allocation6 + $0x20] sm:$0xff]
        %v614 = vld [vmem:[#allocation6 + $0x28] sm:$0xff]
        %v615 = vld [vmem:[#allocation6 + $0x30] sm:$0xff]
        %v616 = vld [vmem:[#allocation6 + $0x38] sm:$0xff]
        %v617 = vld [vmem:[#allocation8 + $0x20] sm:$0xff]
        %v618 = vld [vmem:[#allocation8 + $0x28] sm:$0xff]
        %v619 = vld [vmem:[#allocation8 + $0x30] sm:$0xff]
        %v620 = vld [vmem:[#allocation8 + $0x38] sm:$0xff]
        %v621 = vld [vmem:[%s3 + $0x2] sm:$0x3]
        %622 = vst.msk [vmem:[#allocation2] ss:$8 sm:$0x3] %vm250, %v612
        %623 = vst.msk [vmem:[#allocation2] ss:$8 sm:$0x0] %vm250, %v612
        %v624 = vld [vmem:[#allocation2] sm:$0xff]
        %v625 = vld [vmem:[#allocation2 + $0x8] sm:$0xff]
        %v627 = vsel %vm270, %v613, 0
        %v630 = vsel %vm270, %v614, 0
        %v633 = vsel %vm270, %v615, 0
        %v636 = vsel %vm270, %v616, 0
        %638 = vmatprep.subr.mxu0 %v625
        %639 = vmatpush1.msra.mxu0 %v624
        %640 = vmatprep.subr.mxu0 0.0
        %641 = vmatpush1.msra.mxu0 0.0
        %642 = vmatprep.subr.mxu0 0.0
        %643 = vmatpush1.msra.mxu0 0.0
        %644 = vmatprep.subr.mxu0 0.0
        %645 = vmatpush1.msra.mxu0 0.0
        %646 = vmatprep.subr.mxu0 0.0
        %647 = vmatpush1.msra.mxu0 0.0
        %648 = vmatprep.subr.mxu0 0.0
        %649 = vmatpush1.msra.mxu0 0.0
        %650 = vmatprep.subr.mxu0 0.0
        %651 = vmatpush1.msra.mxu0 0.0
        %652 = vmatprep.subr.mxu0 0.0
        %653 = vmatpush1.msra.mxu0 0.0
        %654 = vmatprep.subr.mxu0 0.0
        %655 = vmatpush1.msra.mxu0 0.0
        %656 = vmatprep.subr.mxu0 0.0
        %657 = vmatpush1.msra.mxu0 0.0
        %658 = vmatprep.subr.mxu0 0.0
        %659 = vmatpush1.msra.mxu0 0.0
        %660 = vmatprep.subr.mxu0 0.0
        %661 = vmatpush1.msra.mxu0 0.0
        %662 = vmatprep.subr.mxu0 0.0
        %663 = vmatpush1.msra.mxu0 0.0
        %664 = vmatprep.subr.mxu0 0.0
        %665 = vmatpush1.msra.mxu0 0.0
        %666 = vmatprep.subr.mxu0 0.0
        %667 = vmatpush1.msra.mxu0 0.0
        %668 = vmatprep.subr.mxu0 0.0
        %669 = vmatpush1.msra.mxu0 0.0
        %670 = vmatprep.subr.mxu0 0.0
        %671 = vmatpush1.msra.mxu0 0.0
        %672 = vmatprep.subr.mxu0 0.0
        %673 = vmatpush1.msra.mxu0 0.0
        %674 = vmatprep.subr.mxu0 0.0
        %675 = vmatpush1.msra.mxu0 0.0
        %676 = vmatprep.subr.mxu0 0.0
        %677 = vmatpush1.msra.mxu0 0.0
        %678 = vmatprep.subr.mxu0 0.0
        %679 = vmatpush1.msra.mxu0 0.0
        %680 = vmatprep.subr.mxu0 0.0
        %681 = vmatpush1.msra.mxu0 0.0
        %682 = vmatprep.subr.mxu0 0.0
        %683 = vmatpush1.msra.mxu0 0.0
        %684 = vmatprep.subr.mxu0 0.0
        %685 = vmatpush1.msra.mxu0 0.0
        %686 = vmatprep.subr.mxu0 0.0
        %687 = vmatpush1.msra.mxu0 0.0
        %688 = vmatprep.subr.mxu0 0.0
        %689 = vmatpush1.msra.mxu0 0.0
        %690 = vmatprep.subr.mxu0 0.0
        %691 = vmatpush1.msra.mxu0 0.0
        %692 = vmatprep.subr.mxu0 0.0
        %693 = vmatpush1.msra.mxu0 0.0
        %694 = vmatprep.subr.mxu0 0.0
        %695 = vmatpush1.msra.mxu0 0.0
        %696 = vmatprep.subr.mxu0 0.0
        %697 = vmatpush1.msra.mxu0 0.0
        %698 = vmatprep.subr.mxu0 0.0
        %699 = vmatpush1.msra.mxu0 0.0
        %700 = vmatprep.subr.mxu0 0.0
        %701 = vmatpush1.msra.mxu0 0.0
        %702 = vmatprep.mubr.f32.mxu0 0.0
        %703 = vmatmul.mubr.f32.gmra.mrb[0].mxu0 %v627
        %v704 = vpop.f32.mrb[0].mxu0
        %v705 = vadd.f32 0.0, %v704
        %v706 = vpop.f32.mrb[0].mxu0
        %v707 = vadd.f32 0.0, %v706
        %708 = vmatprep.mubr.f32.mxu0 0.0
        %709 = vmatmul.mubr.f32.gmra.mrb[0].mxu0 %v630
        %v710 = vpop.f32.mrb[0].mxu0
        %v711 = vadd.f32 0.0, %v710
        %v712 = vpop.f32.mrb[0].mxu0
        %v713 = vadd.f32 0.0, %v712
        %714 = vmatprep.mubr.f32.mxu0 0.0
        %715 = vmatmul.mubr.f32.gmra.mrb[0].mxu0 %v633
        %v716 = vpop.f32.mrb[0].mxu0
        %v717 = vadd.f32 0.0, %v716
        %v718 = vpop.f32.mrb[0].mxu0
        %v719 = vadd.f32 0.0, %v718
        %720 = vmatprep.mubr.f32.mxu0 0.0
        %721 = vmatmul.mubr.f32.gmra.mrb[0].mxu0 %v636
        %v722 = vpop.f32.mrb[0].mxu0
        %v723 = vadd.f32 0.0, %v722
        %v724 = vpop.f32.mrb[0].mxu0
        %v725 = vadd.f32 0.0, %v724
        %726 = vdwg.mxu0
        %v727 = vmax.f32 %v705, 0.0
        %v728 = vmax.f32 %v707, 0.0
        %v729 = vmax.f32 %v711, 0.0
        %v730 = vmax.f32 %v713, 0.0
        %v731 = vmax.f32 %v717, 0.0
        %v732 = vmax.f32 %v719, 0.0
        %v733 = vmax.f32 %v723, 0.0
        %v734 = vmax.f32 %v725, 0.0
        %736 = vset.pattern.permute.xlu0 32
        %737 = vperm.xlu0 %736, %v617
        %v738 = vpop.permute.xlu0 %737
        %741 = vset.pattern.permute.xlu0 32
        %742 = vperm.xlu0 %741, %v618
        %v743 = vpop.permute.xlu0 %742
        %746 = vset.pattern.permute.xlu0 32
        %747 = vperm.xlu0 %746, %v619
        %v748 = vpop.permute.xlu0 %747
        %751 = vset.pattern.permute.xlu0 32
        %752 = vperm.xlu0 %751, %v620
        %v753 = vpop.permute.xlu0 %752
        %v755 = vsel %vm400, %v617, 0
        %v757 = vsel %vm400, %v618, 0
        %v759 = vsel %vm400, %v619, 0
        %v761 = vsel %vm400, %v620, 0
        %763 = vmatprep.subr.mxu0 %v728
        %764 = vmatpush1.msra.mxu0 %v727
        %765 = vmatprep.subr.mxu0 %v730
        %766 = vmatpush1.msra.mxu0 %v729
        %767 = vmatprep.subr.mxu0 %v732
        %768 = vmatpush1.msra.mxu0 %v731
        %769 = vmatprep.subr.mxu0 %v734
        %770 = vmatpush1.msra.mxu0 %v733
        %771 = vmatprep.subr.mxu0 0.0
        %772 = vmatpush1.msra.mxu0 0.0
        %773 = vmatprep.subr.mxu0 0.0
        %774 = vmatpush1.msra.mxu0 0.0
        %775 = vmatprep.subr.mxu0 0.0
        %776 = vmatpush1.msra.mxu0 0.0
        %777 = vmatprep.subr.mxu0 0.0
        %778 = vmatpush1.msra.mxu0 0.0
        %779 = vmatprep.subr.mxu0 0.0
        %780 = vmatpush1.msra.mxu0 0.0
        %781 = vmatprep.subr.mxu0 0.0
        %782 = vmatpush1.msra.mxu0 0.0
        %783 = vmatprep.subr.mxu0 0.0
        %784 = vmatpush1.msra.mxu0 0.0
        %785 = vmatprep.subr.mxu0 0.0
        %786 = vmatpush1.msra.mxu0 0.0
        %787 = vmatprep.subr.mxu0 0.0
        %788 = vmatpush1.msra.mxu0 0.0
        %789 = vmatprep.subr.mxu0 0.0
        %790 = vmatpush1.msra.mxu0 0.0
        %791 = vmatprep.subr.mxu0 0.0
        %792 = vmatpush1.msra.mxu0 0.0
        %793 = vmatprep.subr.mxu0 0.0
        %794 = vmatpush1.msra.mxu0 0.0
        %795 = vmatprep.subr.mxu0 0.0
        %796 = vmatpush1.msra.mxu0 0.0
        %797 = vmatprep.subr.mxu0 0.0
        %798 = vmatpush1.msra.mxu0 0.0
        %799 = vmatprep.subr.mxu0 0.0
        %800 = vmatpush1.msra.mxu0 0.0
        %801 = vmatprep.subr.mxu0 0.0
        %802 = vmatpush1.msra.mxu0 0.0
        %803 = vmatprep.subr.mxu0 0.0
        %804 = vmatpush1.msra.mxu0 0.0
        %805 = vmatprep.subr.mxu0 0.0
        %806 = vmatpush1.msra.mxu0 0.0
        %807 = vmatprep.subr.mxu0 0.0
        %808 = vmatpush1.msra.mxu0 0.0
        %809 = vmatprep.subr.mxu0 0.0
        %810 = vmatpush1.msra.mxu0 0.0
        %811 = vmatprep.subr.mxu0 0.0
        %812 = vmatpush1.msra.mxu0 0.0
        %813 = vmatprep.subr.mxu0 0.0
        %814 = vmatpush1.msra.mxu0 0.0
        %815 = vmatprep.subr.mxu0 0.0
        %816 = vmatpush1.msra.mxu0 0.0
        %817 = vmatprep.subr.mxu0 0.0
        %818 = vmatpush1.msra.mxu0 0.0
        %819 = vmatprep.subr.mxu0 0.0
        %820 = vmatpush1.msra.mxu0 0.0
        %821 = vmatprep.subr.mxu0 0.0
        %822 = vmatpush1.msra.mxu0 0.0
        %823 = vmatprep.subr.mxu0 0.0
        %824 = vmatpush1.msra.mxu0 0.0
        %825 = vmatprep.subr.mxu0 0.0
        %826 = vmatpush1.msra.mxu0 0.0
        %827 = vmatprep.mubr.f32.mxu0 0.0
        %828 = vmatmul.mubr.f32.gmra.mrb[0].mxu0 %v755
        %v829 = vpop.f32.mrb[0].mxu0
        %v830 = vadd.f32 %v738, %v829
        %v831 = vpop.f32.mrb[0].mxu0
        %v832 = vadd.f32 %v738, %v831
        %833 = vmatprep.mubr.f32.mxu0 0.0
        %834 = vmatmul.mubr.f32.gmra.mrb[0].mxu0 %v757
        %v835 = vpop.f32.mrb[0].mxu0
        %v836 = vadd.f32 %v743, %v835
        %v837 = vpop.f32.mrb[0].mxu0
        %v838 = vadd.f32 %v743, %v837
        %839 = vmatprep.mubr.f32.mxu0 0.0
        %840 = vmatmul.mubr.f32.gmra.mrb[0].mxu0 %v759
        %v841 = vpop.f32.mrb[0].mxu0
        %v842 = vadd.f32 %v748, %v841
        %v843 = vpop.f32.mrb[0].mxu0
        %v844 = vadd.f32 %v748, %v843
        %845 = vmatprep.mubr.f32.mxu0 0.0
        %846 = vmatmul.mubr.f32.gmra.mrb[0].mxu0 %v761
        %v847 = vpop.f32.mrb[0].mxu0
        %v848 = vadd.f32 %v753, %v847
        %v849 = vpop.f32.mrb[0].mxu0
        %v850 = vadd.f32 %v753, %v849
        %851 = vdwg.mxu0
        %v852 = vmax.f32 %v830, 0.0
        %v853 = vmax.f32 %v832, 0.0
        %v854 = vmax.f32 %v836, 0.0
        %v855 = vmax.f32 %v838, 0.0
        %v856 = vmax.f32 %v842, 0.0
        %v857 = vmax.f32 %v844, 0.0
        %v858 = vmax.f32 %v848, 0.0
        %v859 = vmax.f32 %v850, 0.0
        %861 = vset.pattern.permute.xlu0 32
        %862 = vperm.xlu0 %861, %v621
        %v863 = vpop.permute.xlu0 %862
        %v865 = vsel %vm400, %v621, 0
        %867 = vmatprep.subr.mxu0 %v853
        %868 = vmatpush1.msra.mxu0 %v852
        %869 = vmatprep.subr.mxu0 %v855
        %870 = vmatpush1.msra.mxu0 %v854
        %871 = vmatprep.subr.mxu0 %v857
        %872 = vmatpush1.msra.mxu0 %v856
        %873 = vmatprep.subr.mxu0 %v859
        %874 = vmatpush1.msra.mxu0 %v858
        %875 = vmatprep.subr.mxu0 0.0
        %876 = vmatpush1.msra.mxu0 0.0
        %877 = vmatprep.subr.mxu0 0.0
        %878 = vmatpush1.msra.mxu0 0.0
        %879 = vmatprep.subr.mxu0 0.0
        %880 = vmatpush1.msra.mxu0 0.0
        %881 = vmatprep.subr.mxu0 0.0
        %882 = vmatpush1.msra.mxu0 0.0
        %883 = vmatprep.subr.mxu0 0.0
        %884 = vmatpush1.msra.mxu0 0.0
        %885 = vmatprep.subr.mxu0 0.0
        %886 = vmatpush1.msra.mxu0 0.0
        %887 = vmatprep.subr.mxu0 0.0
        %888 = vmatpush1.msra.mxu0 0.0
        %889 = vmatprep.subr.mxu0 0.0
        %890 = vmatpush1.msra.mxu0 0.0
        %891 = vmatprep.subr.mxu0 0.0
        %892 = vmatpush1.msra.mxu0 0.0
        %893 = vmatprep.subr.mxu0 0.0
        %894 = vmatpush1.msra.mxu0 0.0
        %895 = vmatprep.subr.mxu0 0.0
        %896 = vmatpush1.msra.mxu0 0.0
        %897 = vmatprep.subr.mxu0 0.0
        %898 = vmatpush1.msra.mxu0 0.0
        %899 = vmatprep.subr.mxu0 0.0
        %900 = vmatpush1.msra.mxu0 0.0
        %901 = vmatprep.subr.mxu0 0.0
        %902 = vmatpush1.msra.mxu0 0.0
        %903 = vmatprep.subr.mxu0 0.0
        %904 = vmatpush1.msra.mxu0 0.0
        %905 = vmatprep.subr.mxu0 0.0
        %906 = vmatpush1.msra.mxu0 0.0
        %907 = vmatprep.subr.mxu0 0.0
        %908 = vmatpush1.msra.mxu0 0.0
        %909 = vmatprep.subr.mxu0 0.0
        %910 = vmatpush1.msra.mxu0 0.0
        %911 = vmatprep.subr.mxu0 0.0
        %912 = vmatpush1.msra.mxu0 0.0
        %913 = vmatprep.subr.mxu0 0.0
        %914 = vmatpush1.msra.mxu0 0.0
        %915 = vmatprep.subr.mxu0 0.0
        %916 = vmatpush1.msra.mxu0 0.0
        %917 = vmatprep.subr.mxu0 0.0
        %918 = vmatpush1.msra.mxu0 0.0
        %919 = vmatprep.subr.mxu0 0.0
        %920 = vmatpush1.msra.mxu0 0.0
        %921 = vmatprep.subr.mxu0 0.0
        %922 = vmatpush1.msra.mxu0 0.0
        %923 = vmatprep.subr.mxu0 0.0
        %924 = vmatpush1.msra.mxu0 0.0
        %925 = vmatprep.subr.mxu0 0.0
        %926 = vmatpush1.msra.mxu0 0.0
        %927 = vmatprep.subr.mxu0 0.0
        %928 = vmatpush1.msra.mxu0 0.0
        %929 = vmatprep.subr.mxu0 0.0
        %930 = vmatpush1.msra.mxu0 0.0
        %931 = vmatprep.mubr.f32.mxu0 0.0
        %932 = vmatmul.mubr.f32.gmra.mrb[0].mxu0 %v865
        %v933 = vpop.f32.mrb[0].mxu0
        %v934 = vadd.f32 %v863, %v933
        %v935 = vpop.f32.mrb[0].mxu0
        %v936 = vadd.f32 %v863, %v935
        %937 = vdwg.mxu0
        %v940 = vcombine.low %v934, %v936
        %v942 = vunpack.c.l.s4 1966171168
        %v943 = vunpack.c.0.s8 %v942
        %v944 = vlaneseq
        %v945 = vshrl.u32 %v944, 7
        %v946 = vsub.s32 %v943, %v945
        %v947 = vrot.slane %v940, %v946
        %v949 = vunpack.c.l.s4 1966171168
        %v950 = vunpack.c.0.s8 %v949
        %v951 = vlaneseq
        %v952 = vshrl.u32 %v951, 7
        %v953 = vsub.s32 %v950, %v952
        %v954 = vrot.slane %v947, %v953
        %v956 = vmul.f32 %v256, %v954
        %v957 = vcombine.high %v947, %v947
        %v959 = vunpack.c.l.s4 1966171168
        %v960 = vunpack.c.0.s8 %v959
        %v961 = vlaneseq
        %v962 = vshrl.u32 %v961, 7
        %v963 = vsub.s32 %v960, %v962
        %v964 = vrot.slane %v957, %v963
        %v966 = vadd.f32 %v956, %v964
        %v967 = vmul.f32 %v580, %v934
        %v968 = vmul.f32 %v582, %v936
        %v969 = vld [vmem:[#allocation6 + $0x40] sm:$0xff]
        %v970 = vld [vmem:[#allocation6 + $0x48] sm:$0xff]
        %v971 = vld [vmem:[#allocation6 + $0x50] sm:$0xff]
        %v972 = vld [vmem:[#allocation6 + $0x58] sm:$0xff]
        %v973 = vld [vmem:[#allocation8 + $0x40] sm:$0xff]
        %v974 = vld [vmem:[#allocation8 + $0x48] sm:$0xff]
        %v975 = vld [vmem:[#allocation8 + $0x50] sm:$0xff]
        %v976 = vld [vmem:[#allocation8 + $0x58] sm:$0xff]
        %v977 = vld [vmem:[%s3 + $0x4] sm:$0x3]
        %978 = vst.msk [vmem:[#allocation2] ss:$8 sm:$0x3] %vm250, %v966
        %979 = vst.msk [vmem:[#allocation2] ss:$8 sm:$0x0] %vm250, %v966
        %v980 = vld [vmem:[#allocation2] sm:$0xff]
        %v981 = vld [vmem:[#allocation2 + $0x8] sm:$0xff]
        %v983 = vsel %vm270, %v969, 0
        %v986 = vsel %vm270, %v970, 0
        %v989 = vsel %vm270, %v971, 0
        %v992 = vsel %vm270, %v972, 0
        %994 = vmatprep.subr.mxu0 %v981
        %995 = vmatpush1.msra.mxu0 %v980
        %996 = vmatprep.subr.mxu0 0.0
        %997 = vmatpush1.msra.mxu0 0.0
        %998 = vmatprep.subr.mxu0 0.0
        %999 = vmatpush1.msra.mxu0 0.0
        %1000 = vmatprep.subr.mxu0 0.0
        %1001 = vmatpush1.msra.mxu0 0.0
        %1002 = vmatprep.subr.mxu0 0.0
        %1003 = vmatpush1.msra.mxu0 0.0
        %1004 = vmatprep.subr.mxu0 0.0
        %1005 = vmatpush1.msra.mxu0 0.0
        %1006 = vmatprep.subr.mxu0 0.0
        %1007 = vmatpush1.msra.mxu0 0.0
        %1008 = vmatprep.subr.mxu0 0.0
        %1009 = vmatpush1.msra.mxu0 0.0
        %1010 = vmatprep.subr.mxu0 0.0
        %1011 = vmatpush1.msra.mxu0 0.0
        %1012 = vmatprep.subr.mxu0 0.0
        %1013 = vmatpush1.msra.mxu0 0.0
        %1014 = vmatprep.subr.mxu0 0.0
        %1015 = vmatpush1.msra.mxu0 0.0
        %1016 = vmatprep.subr.mxu0 0.0
        %1017 = vmatpush1.msra.mxu0 0.0
        %1018 = vmatprep.subr.mxu0 0.0
        %1019 = vmatpush1.msra.mxu0 0.0
        %1020 = vmatprep.subr.mxu0 0.0
        %1021 = vmatpush1.msra.mxu0 0.0
        %1022 = vmatprep.subr.mxu0 0.0
        %1023 = vmatpush1.msra.mxu0 0.0
        %1024 = vmatprep.subr.mxu0 0.0
        %1025 = vmatpush1.msra.mxu0 0.0
        %1026 = vmatprep.subr.mxu0 0.0
        %1027 = vmatpush1.msra.mxu0 0.0
        %1028 = vmatprep.subr.mxu0 0.0
        %1029 = vmatpush1.msra.mxu0 0.0
        %1030 = vmatprep.subr.mxu0 0.0
        %1031 = vmatpush1.msra.mxu0 0.0
        %1032 = vmatprep.subr.mxu0 0.0
        %1033 = vmatpush1.msra.mxu0 0.0
        %1034 = vmatprep.subr.mxu0 0.0
        %1035 = vmatpush1.msra.mxu0 0.0
        %1036 = vmatprep.subr.mxu0 0.0
        %1037 = vmatpush1.msra.mxu0 0.0
        %1038 = vmatprep.subr.mxu0 0.0
        %1039 = vmatpush1.msra.mxu0 0.0
        %1040 = vmatprep.subr.mxu0 0.0
        %1041 = vmatpush1.msra.mxu0 0.0
        %1042 = vmatprep.subr.mxu0 0.0
        %1043 = vmatpush1.msra.mxu0 0.0
        %1044 = vmatprep.subr.mxu0 0.0
        %1045 = vmatpush1.msra.mxu0 0.0
        %1046 = vmatprep.subr.mxu0 0.0
        %1047 = vmatpush1.msra.mxu0 0.0
        %1048 = vmatprep.subr.mxu0 0.0
        %1049 = vmatpush1.msra.mxu0 0.0
        %1050 = vmatprep.subr.mxu0 0.0
        %1051 = vmatpush1.msra.mxu0 0.0
        %1052 = vmatprep.subr.mxu0 0.0
        %1053 = vmatpush1.msra.mxu0 0.0
        %1054 = vmatprep.subr.mxu0 0.0
        %1055 = vmatpush1.msra.mxu0 0.0
        %1056 = vmatprep.subr.mxu0 0.0
        %1057 = vmatpush1.msra.mxu0 0.0
        %1058 = vmatprep.mubr.f32.mxu0 0.0
        %1059 = vmatmul.mubr.f32.gmra.mrb[0].mxu0 %v983
        %v1060 = vpop.f32.mrb[0].mxu0
        %v1061 = vadd.f32 0.0, %v1060
        %v1062 = vpop.f32.mrb[0].mxu0
        %v1063 = vadd.f32 0.0, %v1062
        %1064 = vmatprep.mubr.f32.mxu0 0.0
        %1065 = vmatmul.mubr.f32.gmra.mrb[0].mxu0 %v986
        %v1066 = vpop.f32.mrb[0].mxu0
        %v1067 = vadd.f32 0.0, %v1066
        %v1068 = vpop.f32.mrb[0].mxu0
        %v1069 = vadd.f32 0.0, %v1068
        %1070 = vmatprep.mubr.f32.mxu0 0.0
        %1071 = vmatmul.mubr.f32.gmra.mrb[0].mxu0 %v989
        %v1072 = vpop.f32.mrb[0].mxu0
        %v1073 = vadd.f32 0.0, %v1072
        %v1074 = vpop.f32.mrb[0].mxu0
        %v1075 = vadd.f32 0.0, %v1074
        %1076 = vmatprep.mubr.f32.mxu0 0.0
        %1077 = vmatmul.mubr.f32.gmra.mrb[0].mxu0 %v992
        %v1078 = vpop.f32.mrb[0].mxu0
        %v1079 = vadd.f32 0.0, %v1078
        %v1080 = vpop.f32.mrb[0].mxu0
        %v1081 = vadd.f32 0.0, %v1080
        %1082 = vdwg.mxu0
        %v1083 = vmax.f32 %v1061, 0.0
        %v1084 = vmax.f32 %v1063, 0.0
        %v1085 = vmax.f32 %v1067, 0.0
        %v1086 = vmax.f32 %v1069, 0.0
        %v1087 = vmax.f32 %v1073, 0.0
        %v1088 = vmax.f32 %v1075, 0.0
        %v1089 = vmax.f32 %v1079, 0.0
        %v1090 = vmax.f32 %v1081, 0.0
        %1092 = vset.pattern.permute.xlu0 32
        %1093 = vperm.xlu0 %1092, %v973
        %v1094 = vpop.permute.xlu0 %1093
        %1097 = vset.pattern.permute.xlu0 32
        %1098 = vperm.xlu0 %1097, %v974
        %v1099 = vpop.permute.xlu0 %1098
        %1102 = vset.pattern.permute.xlu0 32
        %1103 = vperm.xlu0 %1102, %v975
        %v1104 = vpop.permute.xlu0 %1103
        %1107 = vset.pattern.permute.xlu0 32
        %1108 = vperm.xlu0 %1107, %v976
        %v1109 = vpop.permute.xlu0 %1108
        %v1111 = vsel %vm400, %v973, 0
        %v1113 = vsel %vm400, %v974, 0
        %v1115 = vsel %vm400, %v975, 0
        %v1117 = vsel %vm400, %v976, 0
        %1119 = vmatprep.subr.mxu0 %v1084
        %1120 = vmatpush1.msra.mxu0 %v1083
        %1121 = vmatprep.subr.mxu0 %v1086
        %1122 = vmatpush1.msra.mxu0 %v1085
        %1123 = vmatprep.subr.mxu0 %v1088
        %1124 = vmatpush1.msra.mxu0 %v1087
        %1125 = vmatprep.subr.mxu0 %v1090
        %1126 = vmatpush1.msra.mxu0 %v1089
        %1127 = vmatprep.subr.mxu0 0.0
        %1128 = vmatpush1.msra.mxu0 0.0
        %1129 = vmatprep.subr.mxu0 0.0
        %1130 = vmatpush1.msra.mxu0 0.0
        %1131 = vmatprep.subr.mxu0 0.0
        %1132 = vmatpush1.msra.mxu0 0.0
        %1133 = vmatprep.subr.mxu0 0.0
        %1134 = vmatpush1.msra.mxu0 0.0
        %1135 = vmatprep.subr.mxu0 0.0
        %1136 = vmatpush1.msra.mxu0 0.0
        %1137 = vmatprep.subr.mxu0 0.0
        %1138 = vmatpush1.msra.mxu0 0.0
        %1139 = vmatprep.subr.mxu0 0.0
        %1140 = vmatpush1.msra.mxu0 0.0
        %1141 = vmatprep.subr.mxu0 0.0
        %1142 = vmatpush1.msra.mxu0 0.0
        %1143 = vmatprep.subr.mxu0 0.0
        %1144 = vmatpush1.msra.mxu0 0.0
        %1145 = vmatprep.subr.mxu0 0.0
        %1146 = vmatpush1.msra.mxu0 0.0
        %1147 = vmatprep.subr.mxu0 0.0
        %1148 = vmatpush1.msra.mxu0 0.0
        %1149 = vmatprep.subr.mxu0 0.0
        %1150 = vmatpush1.msra.mxu0 0.0
        %1151 = vmatprep.subr.mxu0 0.0
        %1152 = vmatpush1.msra.mxu0 0.0
        %1153 = vmatprep.subr.mxu0 0.0
        %1154 = vmatpush1.msra.mxu0 0.0
        %1155 = vmatprep.subr.mxu0 0.0
        %1156 = vmatpush1.msra.mxu0 0.0
        %1157 = vmatprep.subr.mxu0 0.0
        %1158 = vmatpush1.msra.mxu0 0.0
        %1159 = vmatprep.subr.mxu0 0.0
        %1160 = vmatpush1.msra.mxu0 0.0
        %1161 = vmatprep.subr.mxu0 0.0
        %1162 = vmatpush1.msra.mxu0 0.0
        %1163 = vmatprep.subr.mxu0 0.0
        %1164 = vmatpush1.msra.mxu0 0.0
        %1165 = vmatprep.subr.mxu0 0.0
        %1166 = vmatpush1.msra.mxu0 0.0
        %1167 = vmatprep.subr.mxu0 0.0
        %1168 = vmatpush1.msra.mxu0 0.0
        %1169 = vmatprep.subr.mxu0 0.0
        %1170 = vmatpush1.msra.mxu0 0.0
        %1171 = vmatprep.subr.mxu0 0.0
        %1172 = vmatpush1.msra.mxu0 0.0
        %1173 = vmatprep.subr.mxu0 0.0
        %1174 = vmatpush1.msra.mxu0 0.0
        %1175 = vmatprep.subr.mxu0 0.0
        %1176 = vmatpush1.msra.mxu0 0.0
        %1177 = vmatprep.subr.mxu0 0.0
        %1178 = vmatpush1.msra.mxu0 0.0
        %1179 = vmatprep.subr.mxu0 0.0
        %1180 = vmatpush1.msra.mxu0 0.0
        %1181 = vmatprep.subr.mxu0 0.0
        %1182 = vmatpush1.msra.mxu0 0.0
        %1183 = vmatprep.mubr.f32.mxu0 0.0
        %1184 = vmatmul.mubr.f32.gmra.mrb[0].mxu0 %v1111
        %v1185 = vpop.f32.mrb[0].mxu0
        %v1186 = vadd.f32 %v1094, %v1185
        %v1187 = vpop.f32.mrb[0].mxu0
        %v1188 = vadd.f32 %v1094, %v1187
        %1189 = vmatprep.mubr.f32.mxu0 0.0
        %1190 = vmatmul.mubr.f32.gmra.mrb[0].mxu0 %v1113
        %v1191 = vpop.f32.mrb[0].mxu0
        %v1192 = vadd.f32 %v1099, %v1191
        %v1193 = vpop.f32.mrb[0].mxu0
        %v1194 = vadd.f32 %v1099, %v1193
        %1195 = vmatprep.mubr.f32.mxu0 0.0
        %1196 = vmatmul.mubr.f32.gmra.mrb[0].mxu0 %v1115
        %v1197 = vpop.f32.mrb[0].mxu0
        %v1198 = vadd.f32 %v1104, %v1197
        %v1199 = vpop.f32.mrb[0].mxu0
        %v1200 = vadd.f32 %v1104, %v1199
        %1201 = vmatprep.mubr.f32.mxu0 0.0
        %1202 = vmatmul.mubr.f32.gmra.mrb[0].mxu0 %v1117
        %v1203 = vpop.f32.mrb[0].mxu0
        %v1204 = vadd.f32 %v1109, %v1203
        %v1205 = vpop.f32.mrb[0].mxu0
        %v1206 = vadd.f32 %v1109, %v1205
        %1207 = vdwg.mxu0
        %v1208 = vmax.f32 %v1186, 0.0
        %v1209 = vmax.f32 %v1188, 0.0
        %v1210 = vmax.f32 %v1192, 0.0
        %v1211 = vmax.f32 %v1194, 0.0
        %v1212 = vmax.f32 %v1198, 0.0
        %v1213 = vmax.f32 %v1200, 0.0
        %v1214 = vmax.f32 %v1204, 0.0
        %v1215 = vmax.f32 %v1206, 0.0
        %1217 = vset.pattern.permute.xlu0 32
        %1218 = vperm.xlu0 %1217, %v977
        %v1219 = vpop.permute.xlu0 %1218
        %v1221 = vsel %vm400, %v977, 0
        %1223 = vmatprep.subr.mxu0 %v1209
        %1224 = vmatpush1.msra.mxu0 %v1208
        %1225 = vmatprep.subr.mxu0 %v1211
        %1226 = vmatpush1.msra.mxu0 %v1210
        %1227 = vmatprep.subr.mxu0 %v1213
        %1228 = vmatpush1.msra.mxu0 %v1212
        %1229 = vmatprep.subr.mxu0 %v1215
        %1230 = vmatpush1.msra.mxu0 %v1214
        %1231 = vmatprep.subr.mxu0 0.0
        %1232 = vmatpush1.msra.mxu0 0.0
        %1233 = vmatprep.subr.mxu0 0.0
        %1234 = vmatpush1.msra.mxu0 0.0
        %1235 = vmatprep.subr.mxu0 0.0
        %1236 = vmatpush1.msra.mxu0 0.0
        %1237 = vmatprep.subr.mxu0 0.0
        %1238 = vmatpush1.msra.mxu0 0.0
        %1239 = vmatprep.subr.mxu0 0.0
        %1240 = vmatpush1.msra.mxu0 0.0
        %1241 = vmatprep.subr.mxu0 0.0
        %1242 = vmatpush1.msra.mxu0 0.0
        %1243 = vmatprep.subr.mxu0 0.0
        %1244 = vmatpush1.msra.mxu0 0.0
        %1245 = vmatprep.subr.mxu0 0.0
        %1246 = vmatpush1.msra.mxu0 0.0
        %1247 = vmatprep.subr.mxu0 0.0
        %1248 = vmatpush1.msra.mxu0 0.0
        %1249 = vmatprep.subr.mxu0 0.0
        %1250 = vmatpush1.msra.mxu0 0.0
        %1251 = vmatprep.subr.mxu0 0.0
        %1252 = vmatpush1.msra.mxu0 0.0
        %1253 = vmatprep.subr.mxu0 0.0
        %1254 = vmatpush1.msra.mxu0 0.0
        %1255 = vmatprep.subr.mxu0 0.0
        %1256 = vmatpush1.msra.mxu0 0.0
        %1257 = vmatprep.subr.mxu0 0.0
        %1258 = vmatpush1.msra.mxu0 0.0
        %1259 = vmatprep.subr.mxu0 0.0
        %1260 = vmatpush1.msra.mxu0 0.0
        %1261 = vmatprep.subr.mxu0 0.0
        %1262 = vmatpush1.msra.mxu0 0.0
        %1263 = vmatprep.subr.mxu0 0.0
        %1264 = vmatpush1.msra.mxu0 0.0
        %1265 = vmatprep.subr.mxu0 0.0
        %1266 = vmatpush1.msra.mxu0 0.0
        %1267 = vmatprep.subr.mxu0 0.0
        %1268 = vmatpush1.msra.mxu0 0.0
        %1269 = vmatprep.subr.mxu0 0.0
        %1270 = vmatpush1.msra.mxu0 0.0
        %1271 = vmatprep.subr.mxu0 0.0
        %1272 = vmatpush1.msra.mxu0 0.0
        %1273 = vmatprep.subr.mxu0 0.0
        %1274 = vmatpush1.msra.mxu0 0.0
        %1275 = vmatprep.subr.mxu0 0.0
        %1276 = vmatpush1.msra.mxu0 0.0
        %1277 = vmatprep.subr.mxu0 0.0
        %1278 = vmatpush1.msra.mxu0 0.0
        %1279 = vmatprep.subr.mxu0 0.0
        %1280 = vmatpush1.msra.mxu0 0.0
        %1281 = vmatprep.subr.mxu0 0.0
        %1282 = vmatpush1.msra.mxu0 0.0
        %1283 = vmatprep.subr.mxu0 0.0
        %1284 = vmatpush1.msra.mxu0 0.0
        %1285 = vmatprep.subr.mxu0 0.0
        %1286 = vmatpush1.msra.mxu0 0.0
        %1287 = vmatprep.mubr.f32.mxu0 0.0
        %1288 = vmatmul.mubr.f32.gmra.mrb[0].mxu0 %v1221
        %v1289 = vpop.f32.mrb[0].mxu0
        %v1290 = vadd.f32 %v1219, %v1289
        %v1291 = vpop.f32.mrb[0].mxu0
        %v1292 = vadd.f32 %v1219, %v1291
        %1293 = vdwg.mxu0
        %v1296 = vcombine.low %v1290, %v1292
        %v1298 = vunpack.c.l.s4 1966171168
        %v1299 = vunpack.c.0.s8 %v1298
        %v1300 = vlaneseq
        %v1301 = vshrl.u32 %v1300, 7
        %v1302 = vsub.s32 %v1299, %v1301
        %v1303 = vrot.slane %v1296, %v1302
        %v1305 = vunpack.c.l.s4 1966171168
        %v1306 = vunpack.c.0.s8 %v1305
        %v1307 = vlaneseq
        %v1308 = vshrl.u32 %v1307, 7
        %v1309 = vsub.s32 %v1306, %v1308
        %v1310 = vrot.slane %v1303, %v1309
        %v1312 = vmul.f32 %v612, %v1310
        %v1313 = vcombine.high %v1303, %v1303
        %v1315 = vunpack.c.l.s4 1966171168
        %v1316 = vunpack.c.0.s8 %v1315
        %v1317 = vlaneseq
        %v1318 = vshrl.u32 %v1317, 7
        %v1319 = vsub.s32 %v1316, %v1318
        %v1320 = vrot.slane %v1313, %v1319
        %v1322 = vadd.f32 %v1312, %v1320
        %v1323 = vmul.f32 %v967, %v1290
        %v1324 = vmul.f32 %v968, %v1292
        %v1325 = vld [vmem:[#allocation6 + $0x60] sm:$0xff]
        %v1326 = vld [vmem:[#allocation6 + $0x68] sm:$0xff]
        %v1327 = vld [vmem:[#allocation6 + $0x70] sm:$0xff]
        %v1328 = vld [vmem:[#allocation6 + $0x78] sm:$0xff]
        %v1329 = vld [vmem:[#allocation8 + $0x60] sm:$0xff]
        %v1330 = vld [vmem:[#allocation8 + $0x68] sm:$0xff]
        %v1331 = vld [vmem:[#allocation8 + $0x70] sm:$0xff]
        %v1332 = vld [vmem:[#allocation8 + $0x78] sm:$0xff]
        %v1333 = vld [vmem:[%s3 + $0x6] sm:$0x3]
        %1334 = vst.msk [vmem:[#allocation2] ss:$8 sm:$0x3] %vm250, %v1322
        %1335 = vst.msk [vmem:[#allocation2] ss:$8 sm:$0x0] %vm250, %v1322
        %v1336 = vld [vmem:[#allocation2] sm:$0xff]
        %v1337 = vld [vmem:[#allocation2 + $0x8] sm:$0xff]
        %v1339 = vsel %vm270, %v1325, 0
        %v1342 = vsel %vm270, %v1326, 0
        %v1345 = vsel %vm270, %v1327, 0
        %v1348 = vsel %vm270, %v1328, 0
        %1350 = vmatprep.subr.mxu0 %v1337
        %1351 = vmatpush1.msra.mxu0 %v1336
        %1352 = vmatprep.subr.mxu0 0.0
        %1353 = vmatpush1.msra.mxu0 0.0
        %1354 = vmatprep.subr.mxu0 0.0
        %1355 = vmatpush1.msra.mxu0 0.0
        %1356 = vmatprep.subr.mxu0 0.0
        %1357 = vmatpush1.msra.mxu0 0.0
        %1358 = vmatprep.subr.mxu0 0.0
        %1359 = vmatpush1.msra.mxu0 0.0
        %1360 = vmatprep.subr.mxu0 0.0
        %1361 = vmatpush1.msra.mxu0 0.0
        %1362 = vmatprep.subr.mxu0 0.0
        %1363 = vmatpush1.msra.mxu0 0.0
        %1364 = vmatprep.subr.mxu0 0.0
        %1365 = vmatpush1.msra.mxu0 0.0
        %1366 = vmatprep.subr.mxu0 0.0
        %1367 = vmatpush1.msra.mxu0 0.0
        %1368 = vmatprep.subr.mxu0 0.0
        %1369 = vmatpush1.msra.mxu0 0.0
        %1370 = vmatprep.subr.mxu0 0.0
        %1371 = vmatpush1.msra.mxu0 0.0
        %1372 = vmatprep.subr.mxu0 0.0
        %1373 = vmatpush1.msra.mxu0 0.0
        %1374 = vmatprep.subr.mxu0 0.0
        %1375 = vmatpush1.msra.mxu0 0.0
        %1376 = vmatprep.subr.mxu0 0.0
        %1377 = vmatpush1.msra.mxu0 0.0
        %1378 = vmatprep.subr.mxu0 0.0
        %1379 = vmatpush1.msra.mxu0 0.0
        %1380 = vmatprep.subr.mxu0 0.0
        %1381 = vmatpush1.msra.mxu0 0.0
        %1382 = vmatprep.subr.mxu0 0.0
        %1383 = vmatpush1.msra.mxu0 0.0
        %1384 = vmatprep.subr.mxu0 0.0
        %1385 = vmatpush1.msra.mxu0 0.0
        %1386 = vmatprep.subr.mxu0 0.0
        %1387 = vmatpush1.msra.mxu0 0.0
        %1388 = vmatprep.subr.mxu0 0.0
        %1389 = vmatpush1.msra.mxu0 0.0
        %1390 = vmatprep.subr.mxu0 0.0
        %1391 = vmatpush1.msra.mxu0 0.0
        %1392 = vmatprep.subr.mxu0 0.0
        %1393 = vmatpush1.msra.mxu0 0.0
        %1394 = vmatprep.subr.mxu0 0.0
        %1395 = vmatpush1.msra.mxu0 0.0
        %1396 = vmatprep.subr.mxu0 0.0
        %1397 = vmatpush1.msra.mxu0 0.0
        %1398 = vmatprep.subr.mxu0 0.0
        %1399 = vmatpush1.msra.mxu0 0.0
        %1400 = vmatprep.subr.mxu0 0.0
        %1401 = vmatpush1.msra.mxu0 0.0
        %1402 = vmatprep.subr.mxu0 0.0
        %1403 = vmatpush1.msra.mxu0 0.0
        %1404 = vmatprep.subr.mxu0 0.0
        %1405 = vmatpush1.msra.mxu0 0.0
        %1406 = vmatprep.subr.mxu0 0.0
        %1407 = vmatpush1.msra.mxu0 0.0
        %1408 = vmatprep.subr.mxu0 0.0
        %1409 = vmatpush1.msra.mxu0 0.0
        %1410 = vmatprep.subr.mxu0 0.0
        %1411 = vmatpush1.msra.mxu0 0.0
        %1412 = vmatprep.subr.mxu0 0.0
        %1413 = vmatpush1.msra.mxu0 0.0
        %1414 = vmatprep.mubr.f32.mxu0 0.0
        %1415 = vmatmul.mubr.f32.gmra.mrb[0].mxu0 %v1339
        %v1416 = vpop.f32.mrb[0].mxu0
        %v1417 = vadd.f32 0.0, %v1416
        %v1418 = vpop.f32.mrb[0].mxu0
        %v1419 = vadd.f32 0.0, %v1418
        %1420 = vmatprep.mubr.f32.mxu0 0.0
        %1421 = vmatmul.mubr.f32.gmra.mrb[0].mxu0 %v1342
        %v1422 = vpop.f32.mrb[0].mxu0
        %v1423 = vadd.f32 0.0, %v1422
        %v1424 = vpop.f32.mrb[0].mxu0
        %v1425 = vadd.f32 0.0, %v1424
        %1426 = vmatprep.mubr.f32.mxu0 0.0
        %1427 = vmatmul.mubr.f32.gmra.mrb[0].mxu0 %v1345
        %v1428 = vpop.f32.mrb[0].mxu0
        %v1429 = vadd.f32 0.0, %v1428
        %v1430 = vpop.f32.mrb[0].mxu0
        %v1431 = vadd.f32 0.0, %v1430
        %1432 = vmatprep.mubr.f32.mxu0 0.0
        %1433 = vmatmul.mubr.f32.gmra.mrb[0].mxu0 %v1348
        %v1434 = vpop.f32.mrb[0].mxu0
        %v1435 = vadd.f32 0.0, %v1434
        %v1436 = vpop.f32.mrb[0].mxu0
        %v1437 = vadd.f32 0.0, %v1436
        %1438 = vdwg.mxu0
        %v1439 = vmax.f32 %v1417, 0.0
        %v1440 = vmax.f32 %v1419, 0.0
        %v1441 = vmax.f32 %v1423, 0.0
        %v1442 = vmax.f32 %v1425, 0.0
        %v1443 = vmax.f32 %v1429, 0.0
        %v1444 = vmax.f32 %v1431, 0.0
        %v1445 = vmax.f32 %v1435, 0.0
        %v1446 = vmax.f32 %v1437, 0.0
        %1448 = vset.pattern.permute.xlu0 32
        %1449 = vperm.xlu0 %1448, %v1329
        %v1450 = vpop.permute.xlu0 %1449
        %1453 = vset.pattern.permute.xlu0 32
        %1454 = vperm.xlu0 %1453, %v1330
        %v1455 = vpop.permute.xlu0 %1454
        %1458 = vset.pattern.permute.xlu0 32
        %1459 = vperm.xlu0 %1458, %v1331
        %v1460 = vpop.permute.xlu0 %1459
        %1463 = vset.pattern.permute.xlu0 32
        %1464 = vperm.xlu0 %1463, %v1332
        %v1465 = vpop.permute.xlu0 %1464
        %v1467 = vsel %vm400, %v1329, 0
        %v1469 = vsel %vm400, %v1330, 0
        %v1471 = vsel %vm400, %v1331, 0
        %v1473 = vsel %vm400, %v1332, 0
        %1475 = vmatprep.subr.mxu0 %v1440
        %1476 = vmatpush1.msra.mxu0 %v1439
        %1477 = vmatprep.subr.mxu0 %v1442
        %1478 = vmatpush1.msra.mxu0 %v1441
        %1479 = vmatprep.subr.mxu0 %v1444
        %1480 = vmatpush1.msra.mxu0 %v1443
        %1481 = vmatprep.subr.mxu0 %v1446
        %1482 = vmatpush1.msra.mxu0 %v1445
        %1483 = vmatprep.subr.mxu0 0.0
        %1484 = vmatpush1.msra.mxu0 0.0
        %1485 = vmatprep.subr.mxu0 0.0
        %1486 = vmatpush1.msra.mxu0 0.0
        %1487 = vmatprep.subr.mxu0 0.0
        %1488 = vmatpush1.msra.mxu0 0.0
        %1489 = vmatprep.subr.mxu0 0.0
        %1490 = vmatpush1.msra.mxu0 0.0
        %1491 = vmatprep.subr.mxu0 0.0
        %1492 = vmatpush1.msra.mxu0 0.0
        %1493 = vmatprep.subr.mxu0 0.0
        %1494 = vmatpush1.msra.mxu0 0.0
        %1495 = vmatprep.subr.mxu0 0.0
        %1496 = vmatpush1.msra.mxu0 0.0
        %1497 = vmatprep.subr.mxu0 0.0
        %1498 = vmatpush1.msra.mxu0 0.0
        %1499 = vmatprep.subr.mxu0 0.0
        %1500 = vmatpush1.msra.mxu0 0.0
        %1501 = vmatprep.subr.mxu0 0.0
        %1502 = vmatpush1.msra.mxu0 0.0
        %1503 = vmatprep.subr.mxu0 0.0
        %1504 = vmatpush1.msra.mxu0 0.0
        %1505 = vmatprep.subr.mxu0 0.0
        %1506 = vmatpush1.msra.mxu0 0.0
        %1507 = vmatprep.subr.mxu0 0.0
        %1508 = vmatpush1.msra.mxu0 0.0
        %1509 = vmatprep.subr.mxu0 0.0
        %1510 = vmatpush1.msra.mxu0 0.0
        %1511 = vmatprep.subr.mxu0 0.0
        %1512 = vmatpush1.msra.mxu0 0.0
        %1513 = vmatprep.subr.mxu0 0.0
        %1514 = vmatpush1.msra.mxu0 0.0
        %1515 = vmatprep.subr.mxu0 0.0
        %1516 = vmatpush1.msra.mxu0 0.0
        %1517 = vmatprep.subr.mxu0 0.0
        %1518 = vmatpush1.msra.mxu0 0.0
        %1519 = vmatprep.subr.mxu0 0.0
        %1520 = vmatpush1.msra.mxu0 0.0
        %1521 = vmatprep.subr.mxu0 0.0
        %1522 = vmatpush1.msra.mxu0 0.0
        %1523 = vmatprep.subr.mxu0 0.0
        %1524 = vmatpush1.msra.mxu0 0.0
        %1525 = vmatprep.subr.mxu0 0.0
        %1526 = vmatpush1.msra.mxu0 0.0
        %1527 = vmatprep.subr.mxu0 0.0
        %1528 = vmatpush1.msra.mxu0 0.0
        %1529 = vmatprep.subr.mxu0 0.0
        %1530 = vmatpush1.msra.mxu0 0.0
        %1531 = vmatprep.subr.mxu0 0.0
        %1532 = vmatpush1.msra.mxu0 0.0
        %1533 = vmatprep.subr.mxu0 0.0
        %1534 = vmatpush1.msra.mxu0 0.0
        %1535 = vmatprep.subr.mxu0 0.0
        %1536 = vmatpush1.msra.mxu0 0.0
        %1537 = vmatprep.subr.mxu0 0.0
        %1538 = vmatpush1.msra.mxu0 0.0
        %1539 = vmatprep.mubr.f32.mxu0 0.0
        %1540 = vmatmul.mubr.f32.gmra.mrb[0].mxu0 %v1467
        %v1541 = vpop.f32.mrb[0].mxu0
        %v1542 = vadd.f32 %v1450, %v1541
        %v1543 = vpop.f32.mrb[0].mxu0
        %v1544 = vadd.f32 %v1450, %v1543
        %1545 = vmatprep.mubr.f32.mxu0 0.0
        %1546 = vmatmul.mubr.f32.gmra.mrb[0].mxu0 %v1469
        %v1547 = vpop.f32.mrb[0].mxu0
        %v1548 = vadd.f32 %v1455, %v1547
        %v1549 = vpop.f32.mrb[0].mxu0
        %v1550 = vadd.f32 %v1455, %v1549
        %1551 = vmatprep.mubr.f32.mxu0 0.0
        %1552 = vmatmul.mubr.f32.gmra.mrb[0].mxu0 %v1471
        %v1553 = vpop.f32.mrb[0].mxu0
        %v1554 = vadd.f32 %v1460, %v1553
        %v1555 = vpop.f32.mrb[0].mxu0
        %v1556 = vadd.f32 %v1460, %v1555
        %1557 = vmatprep.mubr.f32.mxu0 0.0
        %1558 = vmatmul.mubr.f32.gmra.mrb[0].mxu0 %v1473
        %v1559 = vpop.f32.mrb[0].mxu0
        %v1560 = vadd.f32 %v1465, %v1559
        %v1561 = vpop.f32.mrb[0].mxu0
        %v1562 = vadd.f32 %v1465, %v1561
        %1563 = vdwg.mxu0
        %v1564 = vmax.f32 %v1542, 0.0
        %v1565 = vmax.f32 %v1544, 0.0
        %v1566 = vmax.f32 %v1548, 0.0
        %v1567 = vmax.f32 %v1550, 0.0
        %v1568 = vmax.f32 %v1554, 0.0
        %v1569 = vmax.f32 %v1556, 0.0
        %v1570 = vmax.f32 %v1560, 0.0
        %v1571 = vmax.f32 %v1562, 0.0
        %1573 = vset.pattern.permute.xlu0 32
        %1574 = vperm.xlu0 %1573, %v1333
        %v1575 = vpop.permute.xlu0 %1574
        %v1577 = vsel %vm400, %v1333, 0
        %1579 = vmatprep.subr.mxu0 %v1565
        %1580 = vmatpush1.msra.mxu0 %v1564
        %1581 = vmatprep.subr.mxu0 %v1567
        %1582 = vmatpush1.msra.mxu0 %v1566
        %1583 = vmatprep.subr.mxu0 %v1569
        %1584 = vmatpush1.msra.mxu0 %v1568
        %1585 = vmatprep.subr.mxu0 %v1571
        %1586 = vmatpush1.msra.mxu0 %v1570
        %1587 = vmatprep.subr.mxu0 0.0
        %1588 = vmatpush1.msra.mxu0 0.0
        %1589 = vmatprep.subr.mxu0 0.0
        %1590 = vmatpush1.msra.mxu0 0.0
        %1591 = vmatprep.subr.mxu0 0.0
        %1592 = vmatpush1.msra.mxu0 0.0
        %1593 = vmatprep.subr.mxu0 0.0
        %1594 = vmatpush1.msra.mxu0 0.0
        %1595 = vmatprep.subr.mxu0 0.0
        %1596 = vmatpush1.msra.mxu0 0.0
        %1597 = vmatprep.subr.mxu0 0.0
        %1598 = vmatpush1.msra.mxu0 0.0
        %1599 = vmatprep.subr.mxu0 0.0
        %1600 = vmatpush1.msra.mxu0 0.0
        %1601 = vmatprep.subr.mxu0 0.0
        %1602 = vmatpush1.msra.mxu0 0.0
        %1603 = vmatprep.subr.mxu0 0.0
        %1604 = vmatpush1.msra.mxu0 0.0
        %1605 = vmatprep.subr.mxu0 0.0
        %1606 = vmatpush1.msra.mxu0 0.0
        %1607 = vmatprep.subr.mxu0 0.0
        %1608 = vmatpush1.msra.mxu0 0.0
        %1609 = vmatprep.subr.mxu0 0.0
        %1610 = vmatpush1.msra.mxu0 0.0
        %1611 = vmatprep.subr.mxu0 0.0
        %1612 = vmatpush1.msra.mxu0 0.0
        %1613 = vmatprep.subr.mxu0 0.0
        %1614 = vmatpush1.msra.mxu0 0.0
        %1615 = vmatprep.subr.mxu0 0.0
        %1616 = vmatpush1.msra.mxu0 0.0
        %1617 = vmatprep.subr.mxu0 0.0
        %1618 = vmatpush1.msra.mxu0 0.0
        %1619 = vmatprep.subr.mxu0 0.0
        %1620 = vmatpush1.msra.mxu0 0.0
        %1621 = vmatprep.subr.mxu0 0.0
        %1622 = vmatpush1.msra.mxu0 0.0
        %1623 = vmatprep.subr.mxu0 0.0
        %1624 = vmatpush1.msra.mxu0 0.0
        %1625 = vmatprep.subr.mxu0 0.0
        %1626 = vmatpush1.msra.mxu0 0.0
        %1627 = vmatprep.subr.mxu0 0.0
        %1628 = vmatpush1.msra.mxu0 0.0
        %1629 = vmatprep.subr.mxu0 0.0
        %1630 = vmatpush1.msra.mxu0 0.0
        %1631 = vmatprep.subr.mxu0 0.0
        %1632 = vmatpush1.msra.mxu0 0.0
        %1633 = vmatprep.subr.mxu0 0.0
        %1634 = vmatpush1.msra.mxu0 0.0
        %1635 = vmatprep.subr.mxu0 0.0
        %1636 = vmatpush1.msra.mxu0 0.0
        %1637 = vmatprep.subr.mxu0 0.0
        %1638 = vmatpush1.msra.mxu0 0.0
        %1639 = vmatprep.subr.mxu0 0.0
        %1640 = vmatpush1.msra.mxu0 0.0
        %1641 = vmatprep.subr.mxu0 0.0
        %1642 = vmatpush1.msra.mxu0 0.0
        %1643 = vmatprep.mubr.f32.mxu0 0.0
        %1644 = vmatmul.mubr.f32.gmra.mrb[0].mxu0 %v1577
        %v1645 = vpop.f32.mrb[0].mxu0
        %v1646 = vadd.f32 %v1575, %v1645
        %v1647 = vpop.f32.mrb[0].mxu0
        %v1648 = vadd.f32 %v1575, %v1647
        %1649 = vdwg.mxu0
        %v1652 = vcombine.low %v1646, %v1648
        %v1654 = vunpack.c.l.s4 1966171168
        %v1655 = vunpack.c.0.s8 %v1654
        %v1656 = vlaneseq
        %v1657 = vshrl.u32 %v1656, 7
        %v1658 = vsub.s32 %v1655, %v1657
        %v1659 = vrot.slane %v1652, %v1658
        %v1661 = vunpack.c.l.s4 1966171168
        %v1662 = vunpack.c.0.s8 %v1661
        %v1663 = vlaneseq
        %v1664 = vshrl.u32 %v1663, 7
        %v1665 = vsub.s32 %v1662, %v1664
        %v1666 = vrot.slane %v1659, %v1665
        %v1668 = vmul.f32 %v966, %v1666
        %v1669 = vcombine.high %v1659, %v1659
        %v1671 = vunpack.c.l.s4 1966171168
        %v1672 = vunpack.c.0.s8 %v1671
        %v1673 = vlaneseq
        %v1674 = vshrl.u32 %v1673, 7
        %v1675 = vsub.s32 %v1672, %v1674
        %v1676 = vrot.slane %v1669, %v1675
        %v1678 = vadd.f32 %v1668, %v1676
        %v1679 = vmul.f32 %v1323, %v1646
        %v1680 = vmul.f32 %v1324, %v1648
        %1681 = vst.msk [vmem:[%s242] ss:$4 sm:$0x3] %vm250, %v1322
        %s1682 = scalar_lea.vmem %s242, 1 [#allocation9]
        %1683 = vst.msk [vmem:[%s1682] ss:$4 sm:$0x3] %vm250, %v1678
        %v1684 = vand.u32 2147483647, %v1679
        %v1685 = vand.u32 2147483647, %v1680
        %v1686 = vlog2.pop %v1684
        %v1687 = vmul.f32 %v1686, 0.6931472
        %v1688 = vlog2.pop %v1685
        %v1689 = vmul.f32 %v1688, 0.6931472
        %v1692 = vcombine.low %v1687, %v1689
        %v1694 = vunpack.c.l.s4 1966171168
        %v1695 = vunpack.c.0.s8 %v1694
        %v1696 = vlaneseq
        %v1697 = vshrl.u32 %v1696, 7
        %v1698 = vsub.s32 %v1695, %v1697
        %v1699 = vrot.slane %v1692, %v1698
        %v1701 = vunpack.c.l.s4 1966171168
        %v1702 = vunpack.c.0.s8 %v1701
        %v1703 = vlaneseq
        %v1704 = vshrl.u32 %v1703, 7
        %v1705 = vsub.s32 %v1702, %v1704
        %v1706 = vrot.slane %v1699, %v1705
        %s1708 = scalar_lea.vmem %s242, 2 [#allocation9]
        %1709 = vst.msk [vmem:[%s1708] ss:$4 sm:$0x3] %vm250, %v1706
        %s1710 = sand.u32 %s119, 1
        %s1711 = scalar_lea.sflag [#allocation5], %s1710
        %s1712 = sand.u32 %s119, 1
        %s1713 = smul.addr %s1712, 8
        %s1714 = scalar_lea.vmem [#allocation9], %s1713
        // Predicated region
        $region49: #{tpu_custom_call.1} parent=35 // pred_check
          %p1715 = pneg %p129
        $region50: #{tpu_custom_call.1} parent=35 // pred_check_branch
          %1717 = sbr.rel (%p1715) target = $region52
        $region51: #{tpu_custom_call.1} parent=35 // pred_region
          %s1718 = smul.u32 2, %s22
          %s1720 = ssub.s32 128, 128
          %1721 = vsyncadd %s1711, %s1720
          %s1722 = smul.addr %s1718, 64
          %s1723 = scalar_lea.hbm %s4, %s1722
          %s1725 = sshll.u32 %s1714, 4
          %s1726 = int_to_ptr.vmem [resolvable:$true] %s1725
          %1728 = dma.vmem_to_hbm [thread:$0]  %s1726, 128, %s1723, %s1711
        $region52: #{tpu_custom_call.1} parent=35 // pred_fallthru
          _
      $region36: #{tpu_custom_call.1} parent=5 // pred_fallthru
        _
      %p1729 = scmp.le.s32.totalorder 2, %s17
      // Predicated region
      $region53: #{tpu_custom_call.1} parent=5 // pred_check
        %p1730 = pneg %p1729
      $region54: #{tpu_custom_call.1} parent=5 // pred_check_branch
        %1732 = sbr.rel (%p1730) target = $region56
      $region55: #{tpu_custom_call.1} parent=5 // pred_region
        %s1733 = ssub.s32 %s17, 2
        // Predicated region
        $region57: #{tpu_custom_call.1} parent=55 // pred_check
          %p1734 = pneg %p135
        $region58: #{tpu_custom_call.1} parent=55 // pred_check_branch
          %1736 = sbr.rel (%p1734) target = $region60
        $region59: #{tpu_custom_call.1} parent=55 // pred_region
          %s1737 = sand.u32 %s120, 1
          %s1738 = scalar_lea.sflag [#allocation5], %s1737
          %s1739 = sand.u32 %s120, 1
          %s1740 = smul.addr %s1739, 8
          %s1741 = scalar_lea.vmem [#allocation9], %s1740
          %1742 = dma.done %s1738, 128
        $region60: #{tpu_custom_call.1} parent=55 // pred_fallthru
          _
      $region56: #{tpu_custom_call.1} parent=5 // pred_fallthru
        _
    $region6: #{tpu_custom_call.1} parent=1 // loop_footer
      %s21 = sadd.s32 1, %s17
    $region7: #{tpu_custom_call.1} parent=1 // loop_footer_branch
      %16 = sbr.rel target = $region3
    $region8: #{tpu_custom_call.1} parent=1 // loop_exit
      _
    %1743 = vsyncpa [#allocation4], 1
    %s1744 = scalar_lea.sflag [#allocation4], 1
    %1745 = vsyncpa %s1744, 1
    %1746 = vsyncpa [#allocation7], 1
    %1747 = vsyncpa [#allocation5], 1
    %s1748 = scalar_lea.sflag [#allocation5], 1
    %1749 = vsyncpa %s1748, 1

</llo_original>
